<compile_context>
chip_gen: v7x
topology: tpu7x:2x2x1
jax: 0.10.0
libtpu: 0.0.40
codegen_flags: <defaults>
</compile_context>

<pallas_src>
import functools

import numpy as np
import jax
import jax.numpy as jnp
from jax import lax
from jax.experimental import pallas as pl
from jax.experimental.pallas import tpu as pltpu


# ---------------------------------------------------------------------------
# JAX glue: 'same' padding + patch extraction (torch Unfold semantics)
# ---------------------------------------------------------------------------
def _same_pad_amounts(H, W, k, s):
    out_h = (H + s - 1) // s
    out_w = (W + s - 1) // s
    ph = max(0, (out_h - 1) * s + k - H)
    pw = max(0, (out_w - 1) * s + k - W)
    return (ph // 2, ph - ph // 2, pw // 2, pw - pw // 2), (out_h, out_w)


def _extract_patches(x, k, s):
    """[B, C, H, W] -> [B, L, C, k, k]  ('same' padding, matches extract_image_patches)."""
    B, C, H, W = x.shape
    (pt, pb, plft, prt), (oh, ow) = _same_pad_amounts(H, W, k, s)
    xp = jnp.pad(x, ((0, 0), (0, 0), (pt, pb), (plft, prt)))
    slices = []
    for ky in range(k):
        for kx in range(k):
            slices.append(xp[:, :, ky:ky + oh * s:s, kx:kx + ow * s:s])  # [B,C,oh,ow]
    p = jnp.stack(slices, axis=2)                 # [B, C, k*k, oh, ow]
    p = p.reshape(B, C, k, k, oh * ow)
    return p.transpose(0, 4, 1, 2, 3)             # [B, L, C, k, k]


def _round_up(n, m):
    return ((n + m - 1) // m) * m


def _pad_last(x, target):
    pad = target - x.shape[-1]
    if pad == 0:
        return x
    return jnp.pad(x, [(0, 0)] * (x.ndim - 1) + [(0, pad)])


# ---------------------------------------------------------------------------
# Static "fuse" plans: both eye(fuse_k) diagonal convolutions expressed as
# constant-offset gathers + separable 0/1 masks in the ORIGINAL (Lb, Lf)
# flattening (so the score matrix never has to be transposed / re-flattened).
# ---------------------------------------------------------------------------
def _fuse_plans(Hb, Wb, Hf, Wf, fuse_k):
    Lb, Lf = Hb * Wb, Hf * Wf
    R = (fuse_k - 1) // 2
    r = np.arange(Lb)
    c = np.arange(Lf)
    hb, wb = r // Wb, r % Wb
    hf, wf = c // Wf, c % Wf

    terms1 = []  # (row_off, col_off, row_mask, col_mask): out[r,c] += mask * s[r+ro, c+co]
    for d in range(-R, R + 1):
        if d == 0:
            continue
        rmask = ((r + d >= 0) & (r + d < Lb)).astype(np.float32)
        cmask = ((c + d >= 0) & (c + d < Lf)).astype(np.float32)
        terms1.append((d, d, rmask, cmask))

    # Second fuse pass: diag conv on the (Wb*Hb, Wf*Hf) flattening.  A flat shift by d
    # there maps, in the original flattening, to one of two constant offsets per axis
    # (no-carry / carry across the h boundary), selected by separable masks.
    terms2 = []
    for d in range(-R, R + 1):
        if d == 0:
            continue
        if d > 0:
            row_br = [(hb < Hb - d, d * Wb),
                      ((hb >= Hb - d) & (wb < Wb - 1), (d - Hb) * Wb + 1)]
            col_br = [(hf < Hf - d, d * Wf),
                      ((hf >= Hf - d) & (wf < Wf - 1), (d - Hf) * Wf + 1)]
        else:
            row_br = [(hb >= -d, d * Wb),
                      ((hb < -d) & (wb > 0), (d + Hb) * Wb - 1)]
            col_br = [(hf >= -d, d * Wf),
                      ((hf < -d) & (wf > 0), (d + Hf) * Wf - 1)]
        for rm, ro in row_br:
            for cm, co in col_br:
                terms2.append((ro, co, rm.astype(np.float32), cm.astype(np.float32)))

    offsets1 = [(ro, co) for (ro, co, _, _) in terms1]
    offsets2 = [(ro, co) for (ro, co, _, _) in terms2]
    all_terms = terms1 + terms2
    T = max(1, len(all_terms))
    row_masks = np.zeros((Lb, T), np.float32)
    col_masks = np.zeros((T, Lf), np.float32)
    for t, (_, _, rm, cm) in enumerate(all_terms):
        row_masks[:, t] = rm
        col_masks[t, :] = cm
    return offsets1, offsets2, jnp.asarray(row_masks), jnp.asarray(col_masks)


# ---------------------------------------------------------------------------
# The fused Pallas kernel (one batch element per grid step; everything in VMEM)
# ---------------------------------------------------------------------------
def _roll2(x, rshift, cshift):
    Lb, Lf = x.shape
    rshift %= Lb
    cshift %= Lf
    if rshift:
        x = pltpu.roll(x, shift=rshift, axis=0)   # XLU sublane rotate
    if cshift:
        x = pltpu.roll(x, shift=cshift, axis=1)   # XLU lane rotate
    return x


def _apply_diag_terms(s, rm, cm, offsets, base):
    # out[r, c] = s[r, c] + sum_t mask_t(r) * mask_t(c) * s[r + ro_t, c + co_t]
    out = s
    for t, (ro, co) in enumerate(offsets):
        v = _roll2(s, -ro, -co)
        out = out + v * rm[:, base + t:base + t + 1] * cm[base + t:base + t + 1, :]
    return out


def _contextual_attention_kernel(w_ref, x_ref, inv_ref, mm_ref, rw_ref,
                                 rm_ref, cm_ref, o_ref, *,
                                 offsets1, offsets2, scale, fuse):
    w = w_ref[0]                      # (Lb, CKp)  f32, background patches
    x = x_ref[0]                      # (Lf, CKp)  f32, foreground patches
    # correlation scores == F.conv2d(xi, wi_normed); row scale folded in afterwards
    s = lax.dot_general(w, x, (((1,), (1,)), ((), ())),
                        precision=lax.Precision.HIGHEST,
                        preferred_element_type=jnp.float32)      # (Lb, Lf)
    s = s * inv_ref[0]                # 1 / sqrt(sum(wi^2 + 1e-4)) per background patch

    if fuse:
        rm = rm_ref[...]
        cm = cm_ref[...]
        s = _apply_diag_terms(s, rm, cm, offsets1, 0)                 # fuse pass 1
        s = _apply_diag_terms(s, rm, cm, offsets2, len(offsets1))     # fuse pass 2

    mmv = mm_ref[0]                   # (Lb, 1) mask-patch means
    logits = s * (mmv * scale)
    logits = logits - jnp.max(logits, axis=0, keepdims=True)
    e = jnp.exp(logits)
    p = e * pl.reciprocal(jnp.sum(e, axis=0, keepdims=True), approx=True)  # EUP recip
    p = p * mmv                       # attention over background patches (Lb axis)

    rw = rw_ref[0]                    # (Lb, CKKp) bf16 full-res background patches
    out = lax.dot_general(p.astype(rw.dtype), rw, (((0,), (0,)), ((), ())),
                          preferred_element_type=jnp.float32)     # (Lf, CKKp)
    o_ref[0] = out.astype(o_ref.dtype)


# ---------------------------------------------------------------------------
# Scatter-free col2im  ==  F.conv_transpose2d(stride=rate, padding=tp_pad)
# ---------------------------------------------------------------------------
def _overlap_add_transpose_conv(agg, B, C, Hf, Wf, K, rate, tp_pad):
    assert K % rate == 0
    vals = agg.reshape(B, Hf, Wf, C, K, K).transpose(0, 3, 1, 2, 4, 5)  # (B,C,Hf,Wf,K,K)
    Hfull = (Hf - 1) * rate + K
    Wfull = (Wf - 1) * rate + K
    out_full = jnp.zeros((B, C, Hfull, Wfull), agg.dtype)
    g = K // rate                                     # == 2 (K = 2*rate): 4 shifted adds
    for a in range(g):
        for bb in range(g):
            blk = vals[:, :, :, :, a * rate:(a + 1) * rate, bb * rate:(bb + 1) * rate]
            img = blk.transpose(0, 1, 2, 4, 3, 5).reshape(B, C, Hf * rate, Wf * rate)
            out_full = out_full + jnp.pad(
                img, ((0, 0), (0, 0),
                      (a * rate, Hfull - Hf * rate - a * rate),
                      (bb * rate, Wfull - Wf * rate - bb * rate)))
    Hout = (Hf - 1) * rate - 2 * tp_pad + K
    Wout = (Wf - 1) * rate - 2 * tp_pad + K
    return out_full[:, :, tp_pad:tp_pad + Hout, tp_pad:tp_pad + Wout]


# ---------------------------------------------------------------------------
# Forward pass
# ---------------------------------------------------------------------------
def contextual_attention(f, b, mask, *, ksize=3, stride=1, rate=2,
                         fuse_k=3, softmax_scale=10.0, fuse=True):
    B, C, Hraw, Wraw = f.shape
    kernel = 2 * rate
    assert fuse_k % 2 == 1

    # raw background patches at full resolution (conv_transpose2d weights)
    raw_w = _extract_patches(b, kernel, rate * stride)          # [B, Lb, C, K, K]
    Lb = raw_w.shape[1]

    # F.interpolate(..., scale_factor=1/rate, mode='nearest') == strided subsample
    fd = f[:, :, ::rate, ::rate]
    bd = b[:, :, ::rate, ::rate]
    md = mask[:, :, ::rate, ::rate]
    Hf, Wf = fd.shape[2], fd.shape[3]
    Hb, Wb = bd.shape[2], bd.shape[3]
    Lf = Hf * Wf
    assert Lb == Hb * Wb

    w = _extract_patches(bd, ksize, stride)                     # [B, Lb, C, k, k]
    xpat = _extract_patches(fd, ksize, 1)                       # [B, Lf, C, k, k]
    m = _extract_patches(md, ksize, stride)                     # [B, Lb, 1, k, k]
    mm = jnp.mean(m, axis=(3, 4)).reshape(B, Lb, 1).astype(jnp.float32)

    CK = C * ksize * ksize
    CKK = C * kernel * kernel
    w_flat = w.reshape(B, Lb, CK).astype(jnp.float32)
    x_flat = xpat.reshape(B, Lf, CK).astype(jnp.float32)
    raw_w_flat = raw_w.reshape(B, Lb, CKK).astype(jnp.float32)

    # reference: wi / sqrt(sum(wi^2 + 1e-4)); fold the per-row scale into the score.
    inv_norm = 1.0 / jnp.sqrt(jnp.sum(w_flat * w_flat + 1e-4, axis=-1, keepdims=True))

    # lane-dense 128-aligned feature dims (zero-padding is exact for the contractions)
    CKp = _round_up(CK, 128)
    CKKp = _round_up(CKK, 128)
    w_p = _pad_last(w_flat, CKp)
    x_p = _pad_last(x_flat, CKp)
    raw_w_p = _pad_last(raw_w_flat, CKKp).astype(jnp.bfloat16)  # bf16 MXU operand, f32 acc

    offsets1, offsets2, row_masks, col_masks = _fuse_plans(Hb, Wb, Hf, Wf, fuse_k)
    T = row_masks.shape[1]

    kern = functools.partial(_contextual_attention_kernel,
                             offsets1=offsets1, offsets2=offsets2,
                             scale=float(softmax_scale), fuse=bool(fuse))

    agg = pl.pallas_call(
        kern,
        out_shape=jax.ShapeDtypeStruct((B, Lf, CKKp), jnp.float32),
        grid=(B,),
        in_specs=[
            pl.BlockSpec((1, Lb, CKp), lambda i: (i, 0, 0)),    # w patches
            pl.BlockSpec((1, Lf, CKp), lambda i: (i, 0, 0)),    # f patches
            pl.BlockSpec((1, Lb, 1), lambda i: (i, 0, 0)),      # 1/||w||
            pl.BlockSpec((1, Lb, 1), lambda i: (i, 0, 0)),      # mask means
            pl.BlockSpec((1, Lb, CKKp), lambda i: (i, 0, 0)),   # raw (full-res) patches
            pl.BlockSpec((Lb, T), lambda i: (0, 0)),            # fuse row masks (shared)
            pl.BlockSpec((T, Lf), lambda i: (0, 0)),            # fuse col masks (shared)
        ],
        out_specs=pl.BlockSpec((1, Lf, CKKp), lambda i: (i, 0, 0)),
        compiler_params=pltpu.CompilerParams(
            dimension_semantics=("parallel",),
            # above the v5e (16 MiB) / v6e,v7x (32 MiB) scoped defaults, with headroom
            # under v7x's 64 MiB physical VMEM.
            vmem_limit_bytes=48 * 1024 * 1024),
    )(w_p, x_p, inv_norm, mm, raw_w_p, row_masks, col_masks)

    agg = agg[:, :, :CKK]
    y = _overlap_add_transpose_conv(agg, B, C, Hf, Wf, kernel, rate, tp_pad=1) / 4.0
    # reference's final `y.contiguous().view(raw_int_fs)` is a no-op on the return value
    return y


# ---------------------------------------------------------------------------
# Pure-JAX f32 line-for-line port of the PyTorch module (in-script self-check)
# ---------------------------------------------------------------------------
def _fuse_diag(s, k):
    B, R, Cc = s.shape
    pt = (k - 1) // 2
    pb = (k - 1) - pt
    p = jnp.pad(s, ((0, 0), (pt, pb), (pt, pb)))
    out = jnp.zeros_like(s)
    for u in range(k):
        out = out + p[:, u:u + R, u:u + Cc]
    return out


def _reference_forward(f, b, mask, *, ksize, stride, rate, fuse_k, softmax_scale, fuse):
    B, C, _, _ = f.shape
    kernel = 2 * rate
    raw_w = _extract_patches(b, kernel, rate * stride)
    Lb = raw_w.shape[1]
    fd = f[:, :, ::rate, ::rate]
    bd = b[:, :, ::rate, ::rate]
    md = mask[:, :, ::rate, ::rate]
    Hf, Wf = fd.shape[2], fd.shape[3]
    Hb, Wb = bd.shape[2], bd.shape[3]
    Lf = Hf * Wf
    w = _extract_patches(bd, ksize, stride).reshape(B, Lb, -1).astype(jnp.float32)
    x = _extract_patches(fd, ksize, 1).reshape(B, Lf, -1).astype(jnp.float32)
    m = _extract_patches(md, ksize, stride)
    mm = jnp.mean(m, axis=(3, 4)).reshape(B, Lb, 1).astype(jnp.float32)
    norm = jnp.sqrt(jnp.sum(w * w + 1e-4, axis=-1, keepdims=True))
    s = jnp.einsum('blk,bpk->blp', w / norm, x, precision=lax.Precision.HIGHEST)
    if fuse:
        s1 = _fuse_diag(s, fuse_k)
        s1p = (s1.reshape(B, Hb, Wb, Hf, Wf).transpose(0, 2, 1, 4, 3)
                 .reshape(B, Lb, Lf))
        s2 = _fuse_diag(s1p, fuse_k)
        s = (s2.reshape(B, Wb, Hb, Wf, Hf).transpose(0, 2, 1, 4, 3)
               .reshape(B, Lb, Lf))
    logits = s * mm * softmax_scale
    p = jax.nn.softmax(logits, axis=1) * mm
    raw_w_flat = raw_w.reshape(B, Lb, -1).astype(jnp.float32)
    agg = jnp.einsum('blp,blq->bpq', p, raw_w_flat, precision=lax.Precision.HIGHEST)
    return _overlap_add_transpose_conv(agg, B, C, Hf, Wf, kernel, rate, 1) / 4.0


if __name__ == "__main__":
    key = jax.random.PRNGKey(0)
    kf, kb, km = jax.random.split(key, 3)
    B, C, H, W = 2, 4, 16, 16
    f = jax.random.normal(kf, (B, C, H, W), dtype=jnp.float32)
    b = jax.random.normal(kb, (B, C, H, W), dtype=jnp.float32)
    mask = (jax.random.uniform(km, (B, 1, H, W)) > 0.5).astype(jnp.float32)

    cfg = dict(ksize=3, stride=1, rate=2, fuse_k=3, softmax_scale=10.0, fuse=True)
    y = jax.jit(functools.partial(contextual_attention, **cfg))(f, b, mask)
    y = jax.block_until_ready(y)
    assert y.shape == (B, C, H, W), y.shape
    assert bool(jnp.isfinite(y).all())

    # correctness self-check vs a pure-JAX f32 port of the PyTorch module
    # (tolerance covers bf16 aggregation + approx reciprocal; a wrong fuse mapping
    #  or softmax would produce O(1) differences)
    y_ref = _reference_forward(f, b, mask, **cfg)
    err = float(jnp.max(jnp.abs(y - y_ref)))
    assert err < 1e-1, f"max abs err vs reference = {err}"

    print("KERNEL_OK")
</pallas_src>

<mosaic_0001>
module attributes {stable_mosaic.version = 11 : i64} {
  func.func @_contextual_attention_kernel(%arg0: i32, %arg1: memref<1x64x128xf32, #tpu.memory_space<vmem>>, %arg2: memref<1x64x128xf32, #tpu.memory_space<vmem>>, %arg3: memref<1x64x1xf32, #tpu.memory_space<vmem>>, %arg4: memref<1x64x1xf32, #tpu.memory_space<vmem>>, %arg5: memref<1x64x128xbf16, #tpu.memory_space<vmem>>, %arg6: memref<64x10xf32, #tpu.memory_space<vmem>>, %arg7: memref<10x64xf32, #tpu.memory_space<vmem>>, %arg8: memref<1x64x128xf32, #tpu.memory_space<vmem>>) attributes {dimension_semantics = [#tpu.dimension_semantics<parallel>], iteration_bounds = array<i64: 2>, scalar_prefetch = 0 : i64, scratch_operands = 0 : i64, tpu.core_type = #tpu.core_type<tc>, window_params = [{transform_indices = @transform_0, window_bounds = array<i64: 1, 64, 128>}, {transform_indices = @transform_1, window_bounds = array<i64: 1, 64, 128>}, {transform_indices = @transform_2, window_bounds = array<i64: 1, 64, 1>}, {transform_indices = @transform_3, window_bounds = array<i64: 1, 64, 1>}, {transform_indices = @transform_4, window_bounds = array<i64: 1, 64, 128>}, {pipeline_mode = #tpu.pipeline_mode<synchronous>, transform_indices = @transform_5, window_bounds = array<i64: 64, 10>}, {pipeline_mode = #tpu.pipeline_mode<synchronous>, transform_indices = @transform_6, window_bounds = array<i64: 10, 64>}, {transform_indices = @transform_7, window_bounds = array<i64: 1, 64, 128>}]} {
    %c0 = arith.constant 0 : index
    %c0_0 = arith.constant 0 : index
    %c0_1 = arith.constant 0 : index
    %0 = vector.load %arg1[%c0, %c0_0, %c0_1] : memref<1x64x128xf32, #tpu.memory_space<vmem>>, vector<1x64x128xf32>
    %1 = vector.shape_cast %0 : vector<1x64x128xf32> to vector<64x128xf32>
    %c0_2 = arith.constant 0 : index
    %c0_3 = arith.constant 0 : index
    %c0_4 = arith.constant 0 : index
    %2 = vector.load %arg2[%c0_2, %c0_3, %c0_4] : memref<1x64x128xf32, #tpu.memory_space<vmem>>, vector<1x64x128xf32>
    %3 = vector.shape_cast %2 : vector<1x64x128xf32> to vector<64x128xf32>
    %cst = arith.constant dense<0.000000e+00> : vector<64x64xf32>
    %4 = tpu.matmul %1, %3, %cst {dimension_numbers = #tpu.dot_dimension_numbers<[1], [1], [0], [0], [0, 0, 1, 0], [], []>, precision = #tpu.contract_precision<fp32>} : vector<64x128xf32>, vector<64x128xf32>, vector<64x64xf32> -> vector<64x64xf32>
    %c0_5 = arith.constant 0 : index
    %c0_6 = arith.constant 0 : index
    %c0_7 = arith.constant 0 : index
    %5 = vector.load %arg3[%c0_5, %c0_6, %c0_7] : memref<1x64x1xf32, #tpu.memory_space<vmem>>, vector<1x64x1xf32>
    %6 = vector.shape_cast %5 : vector<1x64x1xf32> to vector<64x1xf32>
    %7 = vector.broadcast %6 : vector<64x1xf32> to vector<64x64xf32>
    %8 = arith.mulf %4, %7 : vector<64x64xf32>
    %c0_8 = arith.constant 0 : index
    %c0_9 = arith.constant 0 : index
    %9 = vector.load %arg6[%c0_8, %c0_9] : memref<64x10xf32, #tpu.memory_space<vmem>>, vector<64x10xf32>
    %c0_10 = arith.constant 0 : index
    %c0_11 = arith.constant 0 : index
    %10 = vector.load %arg7[%c0_10, %c0_11] : memref<10x64xf32, #tpu.memory_space<vmem>>, vector<10x64xf32>
    %c1_i32 = arith.constant 1 : i32
    %11 = tpu.dynamic_rotate %8 by %c1_i32 dim 0 : vector<64x64xf32>, i32 -> vector<64x64xf32>
    %c1_i32_12 = arith.constant 1 : i32
    %12 = tpu.dynamic_rotate %11 by %c1_i32_12 dim 1 : vector<64x64xf32>, i32 -> vector<64x64xf32>
    %13 = vector.extract_strided_slice %9 {offsets = [0, 0], sizes = [64, 1], strides = [1, 1]} : vector<64x10xf32> to vector<64x1xf32>
    %14 = vector.broadcast %13 : vector<64x1xf32> to vector<64x64xf32>
    %15 = arith.mulf %12, %14 : vector<64x64xf32>
    %16 = vector.extract_strided_slice %10 {offsets = [0, 0], sizes = [1, 64], strides = [1, 1]} : vector<10x64xf32> to vector<1x64xf32>
    %17 = vector.broadcast %16 : vector<1x64xf32> to vector<64x64xf32>
    %18 = arith.mulf %15, %17 : vector<64x64xf32>
    %19 = arith.addf %8, %18 : vector<64x64xf32>
    %c63_i32 = arith.constant 63 : i32
    %20 = tpu.dynamic_rotate %8 by %c63_i32 dim 0 : vector<64x64xf32>, i32 -> vector<64x64xf32>
    %c63_i32_13 = arith.constant 63 : i32
    %21 = tpu.dynamic_rotate %20 by %c63_i32_13 dim 1 : vector<64x64xf32>, i32 -> vector<64x64xf32>
    %22 = vector.extract_strided_slice %9 {offsets = [0, 1], sizes = [64, 1], strides = [1, 1]} : vector<64x10xf32> to vector<64x1xf32>
    %23 = vector.broadcast %22 : vector<64x1xf32> to vector<64x64xf32>
    %24 = arith.mulf %21, %23 : vector<64x64xf32>
    %25 = vector.extract_strided_slice %10 {offsets = [1, 0], sizes = [1, 64], strides = [1, 1]} : vector<10x64xf32> to vector<1x64xf32>
    %26 = vector.broadcast %25 : vector<1x64xf32> to vector<64x64xf32>
    %27 = arith.mulf %24, %26 : vector<64x64xf32>
    %28 = arith.addf %19, %27 : vector<64x64xf32>
    %c8_i32 = arith.constant 8 : i32
    %29 = tpu.dynamic_rotate %28 by %c8_i32 dim 0 : vector<64x64xf32>, i32 -> vector<64x64xf32>
    %c8_i32_14 = arith.constant 8 : i32
    %30 = tpu.dynamic_rotate %29 by %c8_i32_14 dim 1 : vector<64x64xf32>, i32 -> vector<64x64xf32>
    %31 = vector.extract_strided_slice %9 {offsets = [0, 2], sizes = [64, 1], strides = [1, 1]} : vector<64x10xf32> to vector<64x1xf32>
    %32 = vector.broadcast %31 : vector<64x1xf32> to vector<64x64xf32>
    %33 = arith.mulf %30, %32 : vector<64x64xf32>
    %34 = vector.extract_strided_slice %10 {offsets = [2, 0], sizes = [1, 64], strides = [1, 1]} : vector<10x64xf32> to vector<1x64xf32>
    %35 = vector.broadcast %34 : vector<1x64xf32> to vector<64x64xf32>
    %36 = arith.mulf %33, %35 : vector<64x64xf32>
    %37 = arith.addf %28, %36 : vector<64x64xf32>
    %c8_i32_15 = arith.constant 8 : i32
    %38 = tpu.dynamic_rotate %28 by %c8_i32_15 dim 0 : vector<64x64xf32>, i32 -> vector<64x64xf32>
    %c9_i32 = arith.constant 9 : i32
    %39 = tpu.dynamic_rotate %38 by %c9_i32 dim 1 : vector<64x64xf32>, i32 -> vector<64x64xf32>
    %40 = vector.extract_strided_slice %9 {offsets = [0, 3], sizes = [64, 1], strides = [1, 1]} : vector<64x10xf32> to vector<64x1xf32>
    %41 = vector.broadcast %40 : vector<64x1xf32> to vector<64x64xf32>
    %42 = arith.mulf %39, %41 : vector<64x64xf32>
    %43 = vector.extract_strided_slice %10 {offsets = [3, 0], sizes = [1, 64], strides = [1, 1]} : vector<10x64xf32> to vector<1x64xf32>
    %44 = vector.broadcast %43 : vector<1x64xf32> to vector<64x64xf32>
    %45 = arith.mulf %42, %44 : vector<64x64xf32>
    %46 = arith.addf %37, %45 : vector<64x64xf32>
    %c9_i32_16 = arith.constant 9 : i32
    %47 = tpu.dynamic_rotate %28 by %c9_i32_16 dim 0 : vector<64x64xf32>, i32 -> vector<64x64xf32>
    %c8_i32_17 = arith.constant 8 : i32
    %48 = tpu.dynamic_rotate %47 by %c8_i32_17 dim 1 : vector<64x64xf32>, i32 -> vector<64x64xf32>
    %49 = vector.extract_strided_slice %9 {offsets = [0, 4], sizes = [64, 1], strides = [1, 1]} : vector<64x10xf32> to vector<64x1xf32>
    %50 = vector.broadcast %49 : vector<64x1xf32> to vector<64x64xf32>
    %51 = arith.mulf %48, %50 : vector<64x64xf32>
    %52 = vector.extract_strided_slice %10 {offsets = [4, 0], sizes = [1, 64], strides = [1, 1]} : vector<10x64xf32> to vector<1x64xf32>
    %53 = vector.broadcast %52 : vector<1x64xf32> to vector<64x64xf32>
    %54 = arith.mulf %51, %53 : vector<64x64xf32>
    %55 = arith.addf %46, %54 : vector<64x64xf32>
    %c9_i32_18 = arith.constant 9 : i32
    %56 = tpu.dynamic_rotate %28 by %c9_i32_18 dim 0 : vector<64x64xf32>, i32 -> vector<64x64xf32>
    %c9_i32_19 = arith.constant 9 : i32
    %57 = tpu.dynamic_rotate %56 by %c9_i32_19 dim 1 : vector<64x64xf32>, i32 -> vector<64x64xf32>
    %58 = vector.extract_strided_slice %9 {offsets = [0, 5], sizes = [64, 1], strides = [1, 1]} : vector<64x10xf32> to vector<64x1xf32>
    %59 = vector.broadcast %58 : vector<64x1xf32> to vector<64x64xf32>
    %60 = arith.mulf %57, %59 : vector<64x64xf32>
    %61 = vector.extract_strided_slice %10 {offsets = [5, 0], sizes = [1, 64], strides = [1, 1]} : vector<10x64xf32> to vector<1x64xf32>
    %62 = vector.broadcast %61 : vector<1x64xf32> to vector<64x64xf32>
    %63 = arith.mulf %60, %62 : vector<64x64xf32>
    %64 = arith.addf %55, %63 : vector<64x64xf32>
    %c56_i32 = arith.constant 56 : i32
    %65 = tpu.dynamic_rotate %28 by %c56_i32 dim 0 : vector<64x64xf32>, i32 -> vector<64x64xf32>
    %c56_i32_20 = arith.constant 56 : i32
    %66 = tpu.dynamic_rotate %65 by %c56_i32_20 dim 1 : vector<64x64xf32>, i32 -> vector<64x64xf32>
    %67 = vector.extract_strided_slice %9 {offsets = [0, 6], sizes = [64, 1], strides = [1, 1]} : vector<64x10xf32> to vector<64x1xf32>
    %68 = vector.broadcast %67 : vector<64x1xf32> to vector<64x64xf32>
    %69 = arith.mulf %66, %68 : vector<64x64xf32>
    %70 = vector.extract_strided_slice %10 {offsets = [6, 0], sizes = [1, 64], strides = [1, 1]} : vector<10x64xf32> to vector<1x64xf32>
    %71 = vector.broadcast %70 : vector<1x64xf32> to vector<64x64xf32>
    %72 = arith.mulf %69, %71 : vector<64x64xf32>
    %73 = arith.addf %64, %72 : vector<64x64xf32>
    %c56_i32_21 = arith.constant 56 : i32
    %74 = tpu.dynamic_rotate %28 by %c56_i32_21 dim 0 : vector<64x64xf32>, i32 -> vector<64x64xf32>
    %c55_i32 = arith.constant 55 : i32
    %75 = tpu.dynamic_rotate %74 by %c55_i32 dim 1 : vector<64x64xf32>, i32 -> vector<64x64xf32>
    %76 = vector.extract_strided_slice %9 {offsets = [0, 7], sizes = [64, 1], strides = [1, 1]} : vector<64x10xf32> to vector<64x1xf32>
    %77 = vector.broadcast %76 : vector<64x1xf32> to vector<64x64xf32>
    %78 = arith.mulf %75, %77 : vector<64x64xf32>
    %79 = vector.extract_strided_slice %10 {offsets = [7, 0], sizes = [1, 64], strides = [1, 1]} : vector<10x64xf32> to vector<1x64xf32>
    %80 = vector.broadcast %79 : vector<1x64xf32> to vector<64x64xf32>
    %81 = arith.mulf %78, %80 : vector<64x64xf32>
    %82 = arith.addf %73, %81 : vector<64x64xf32>
    %c55_i32_22 = arith.constant 55 : i32
    %83 = tpu.dynamic_rotate %28 by %c55_i32_22 dim 0 : vector<64x64xf32>, i32 -> vector<64x64xf32>
    %c56_i32_23 = arith.constant 56 : i32
    %84 = tpu.dynamic_rotate %83 by %c56_i32_23 dim 1 : vector<64x64xf32>, i32 -> vector<64x64xf32>
    %85 = vector.extract_strided_slice %9 {offsets = [0, 8], sizes = [64, 1], strides = [1, 1]} : vector<64x10xf32> to vector<64x1xf32>
    %86 = vector.broadcast %85 : vector<64x1xf32> to vector<64x64xf32>
    %87 = arith.mulf %84, %86 : vector<64x64xf32>
    %88 = vector.extract_strided_slice %10 {offsets = [8, 0], sizes = [1, 64], strides = [1, 1]} : vector<10x64xf32> to vector<1x64xf32>
    %89 = vector.broadcast %88 : vector<1x64xf32> to vector<64x64xf32>
    %90 = arith.mulf %87, %89 : vector<64x64xf32>
    %91 = arith.addf %82, %90 : vector<64x64xf32>
    %c55_i32_24 = arith.constant 55 : i32
    %92 = tpu.dynamic_rotate %28 by %c55_i32_24 dim 0 : vector<64x64xf32>, i32 -> vector<64x64xf32>
    %c55_i32_25 = arith.constant 55 : i32
    %93 = tpu.dynamic_rotate %92 by %c55_i32_25 dim 1 : vector<64x64xf32>, i32 -> vector<64x64xf32>
    %94 = vector.extract_strided_slice %9 {offsets = [0, 9], sizes = [64, 1], strides = [1, 1]} : vector<64x10xf32> to vector<64x1xf32>
    %95 = vector.broadcast %94 : vector<64x1xf32> to vector<64x64xf32>
    %96 = arith.mulf %93, %95 : vector<64x64xf32>
    %97 = vector.extract_strided_slice %10 {offsets = [9, 0], sizes = [1, 64], strides = [1, 1]} : vector<10x64xf32> to vector<1x64xf32>
    %98 = vector.broadcast %97 : vector<1x64xf32> to vector<64x64xf32>
    %99 = arith.mulf %96, %98 : vector<64x64xf32>
    %100 = arith.addf %91, %99 : vector<64x64xf32>
    %c0_26 = arith.constant 0 : index
    %c0_27 = arith.constant 0 : index
    %c0_28 = arith.constant 0 : index
    %101 = vector.load %arg4[%c0_26, %c0_27, %c0_28] : memref<1x64x1xf32, #tpu.memory_space<vmem>>, vector<1x64x1xf32>
    %102 = vector.shape_cast %101 : vector<1x64x1xf32> to vector<64x1xf32>
    %cst_29 = arith.constant 1.000000e+01 : f32
    %103 = vector.broadcast %cst_29 : f32 to vector<64x1xf32>
    %104 = arith.mulf %102, %103 : vector<64x1xf32>
    %105 = vector.broadcast %104 : vector<64x1xf32> to vector<64x64xf32>
    %106 = arith.mulf %100, %105 : vector<64x64xf32>
    %cst_30 = arith.constant dense<0xFF800000> : vector<64xf32>
    %107 = vector.multi_reduction <maximumf>, %106, %cst_30 [0] : vector<64x64xf32> to vector<64xf32>
    %108 = vector.shape_cast %107 : vector<64xf32> to vector<1x64xf32>
    %109 = vector.broadcast %108 : vector<1x64xf32> to vector<64x64xf32>
    %110 = arith.subf %106, %109 : vector<64x64xf32>
    %111 = math.exp %110 : vector<64x64xf32>
    %cst_31 = arith.constant dense<0.000000e+00> : vector<64xf32>
    %112 = vector.multi_reduction <add>, %111, %cst_31 [0] : vector<64x64xf32> to vector<64xf32>
    %113 = vector.shape_cast %112 : vector<64xf32> to vector<1x64xf32>
    %114 = tpu.reciprocal %113 {approx = true} : vector<1x64xf32> -> vector<1x64xf32>
    %115 = vector.broadcast %114 : vector<1x64xf32> to vector<64x64xf32>
    %116 = arith.mulf %111, %115 : vector<64x64xf32>
    %117 = vector.broadcast %102 : vector<64x1xf32> to vector<64x64xf32>
    %118 = arith.mulf %116, %117 : vector<64x64xf32>
    %c0_32 = arith.constant 0 : index
    %c0_33 = arith.constant 0 : index
    %c0_34 = arith.constant 0 : index
    %119 = vector.load %arg5[%c0_32, %c0_33, %c0_34] : memref<1x64x128xbf16, #tpu.memory_space<vmem>>, vector<1x64x128xbf16>
    %120 = vector.shape_cast %119 : vector<1x64x128xbf16> to vector<64x128xbf16>
    %121 = arith.truncf %118 : vector<64x64xf32> to vector<64x64xbf16>
    %cst_35 = arith.constant dense<0.000000e+00> : vector<64x128xf32>
    %122 = tpu.matmul %121, %120, %cst_35 {dimension_numbers = #tpu.dot_dimension_numbers<[0], [0], [1], [1], [0, 1, 1, 1], [], []>} : vector<64x64xbf16>, vector<64x128xbf16>, vector<64x128xf32> -> vector<64x128xf32>
    %c0_36 = arith.constant 0 : index
    %c0_37 = arith.constant 0 : index
    %c0_38 = arith.constant 0 : index
    %123 = vector.load %arg8[%c0_36, %c0_37, %c0_38] : memref<1x64x128xf32, #tpu.memory_space<vmem>>, vector<1x64x128xf32>
    %124 = vector.shape_cast %123 : vector<1x64x128xf32> to vector<64x128xf32>
    %125 = vector.shape_cast %122 : vector<64x128xf32> to vector<1x64x128xf32>
    tpu.vector_store %arg8[%c0_36, %c0_37, %c0_38], %125 {strides = array<i32>} : memref<1x64x128xf32, #tpu.memory_space<vmem>>, vector<1x64x128xf32>,
    return
  }
  func.func @transform_0(%arg0: i32) -> (i32, i32, i32) {
    %c0_i32 = arith.constant 0 : i32
    %c0_i32_0 = arith.constant 0 : i32
    %c0_i32_1 = arith.constant 0 : i32
    return %arg0, %c0_i32, %c0_i32_0 : i32, i32, i32
  }
  func.func @transform_1(%arg0: i32) -> (i32, i32, i32) {
    %c0_i32 = arith.constant 0 : i32
    %c0_i32_0 = arith.constant 0 : i32
    %c0_i32_1 = arith.constant 0 : i32
    return %arg0, %c0_i32, %c0_i32_0 : i32, i32, i32
  }
  func.func @transform_2(%arg0: i32) -> (i32, i32, i32) {
    %c0_i32 = arith.constant 0 : i32
    %c0_i32_0 = arith.constant 0 : i32
    %c0_i32_1 = arith.constant 0 : i32
    return %arg0, %c0_i32, %c0_i32_0 : i32, i32, i32
  }
  func.func @transform_3(%arg0: i32) -> (i32, i32, i32) {
    %c0_i32 = arith.constant 0 : i32
    %c0_i32_0 = arith.constant 0 : i32
    %c0_i32_1 = arith.constant 0 : i32
    return %arg0, %c0_i32, %c0_i32_0 : i32, i32, i32
  }
  func.func @transform_4(%arg0: i32) -> (i32, i32, i32) {
    %c0_i32 = arith.constant 0 : i32
    %c0_i32_0 = arith.constant 0 : i32
    %c0_i32_1 = arith.constant 0 : i32
    return %arg0, %c0_i32, %c0_i32_0 : i32, i32, i32
  }
  func.func @transform_5(%arg0: i32) -> (i32, i32) {
    %c0_i32 = arith.constant 0 : i32
    %c0_i32_0 = arith.constant 0 : i32
    %c0_i32_1 = arith.constant 0 : i32
    return %c0_i32, %c0_i32_0 : i32, i32
  }
  func.func @transform_6(%arg0: i32) -> (i32, i32) {
    %c0_i32 = arith.constant 0 : i32
    %c0_i32_0 = arith.constant 0 : i32
    %c0_i32_1 = arith.constant 0 : i32
    return %c0_i32, %c0_i32_0 : i32, i32
  }
  func.func @transform_7(%arg0: i32) -> (i32, i32, i32) {
    %c0_i32 = arith.constant 0 : i32
    %c0_i32_0 = arith.constant 0 : i32
    %c0_i32_1 = arith.constant 0 : i32
    return %arg0, %c0_i32, %c0_i32_0 : i32, i32, i32
  }
}

</mosaic_0001>

<llo_original>
// kernel: contextual_attention.1
$region0: #{contextual_attention.1}
  #allocation0 [shape = 'u32[]', space=smem, size = 0x4, offset = 0x4, fixed_abs, tag = 'smem constant byte address 0x4 - core index']
  #allocation1 [shape = 'u32[144,128]{1,0:T(1,128)}', space=vmem, size = 0x12000, scoped, tag = 'internal scratch']
  %s0 = inlined_call_operand.vmem [shape: f32[2,64,128], index: 0, kind: input, shape index: {}]
  %s1 = inlined_call_operand.vmem [shape: f32[2,64,128], index: 1, kind: input, shape index: {}]
  %s2 = inlined_call_operand.vmem [shape: f32[2,64,1], index: 2, kind: input, shape index: {}]
  %s3 = inlined_call_operand.vmem [shape: f32[2,64,1], index: 3, kind: input, shape index: {}]
  %s4 = inlined_call_operand.vmem [shape: bf16[2,64,128], index: 4, kind: input, shape index: {}]
  %s5 = inlined_call_operand.vmem [shape: f32[64,10], index: 5, kind: input, shape index: {}]
  %s6 = inlined_call_operand.vmem [shape: f32[10,64], index: 6, kind: input, shape index: {}]
  %s7 = inlined_call_operand.vmem [shape: f32[2,64,128], index: 7, kind: output, shape index: {}]
  %s8 = sld [smem:[#allocation0]]
  $region61: #{contextual_attention.1} parent=0
    _
  %s10 = ssub.s32 1, %s8
  %s11 = scalar_select 0, %s10, %s8
  loop: start=0, step=1, limit=4
  $region2: #{contextual_attention.1} parent=0 // loop_pre_header
    _
  $region3: #{contextual_attention.1} parent=0 // loop_header
    %s13 = sphi 0, %s17
    %p14 = scmp.ge.s32.totalorder %s13, 4
    %s23 = sphi 0, %s25
    %s26 = sphi 0, %s23
    %s27 = sphi 0, %s26
    %s43 = sphi 0, %s27
    %s49 = sphi 0, %s51
    %s52 = sphi 0, %s49
    %s53 = sphi 0, %s52
    %s69 = sphi 0, %s53
    %s75 = sphi 0, %s77
    %s78 = sphi 0, %s75
    %s79 = sphi 0, %s78
    %s95 = sphi 0, %s79
    %s101 = sphi 0, %s103
    %s104 = sphi 0, %s101
    %s105 = sphi 0, %s104
    %s121 = sphi 0, %s105
    %s127 = sphi 0, %s129
    %s130 = sphi 0, %s127
    %s131 = sphi 0, %s130
    %s147 = sphi 0, %s131
    %s151 = sphi 0, %s151
    %s153 = sphi 0, %s151
    %s154 = sphi 0, %s153
    %s168 = sphi 0, %s154
    %s172 = sphi 0, %s172
    %s174 = sphi 0, %s172
    %s175 = sphi 0, %s174
    %s189 = sphi 0, %s175
    %s195 = sphi 0, %s197
    %s198 = sphi 0, %s195
    %s199 = sphi 0, %s198
    %s215 = sphi 0, %s199
  $region4: #{contextual_attention.1} parent=0 // loop_header_branch
    %16 = sbr.rel (%p14) target = $region8
  $region5: #{contextual_attention.1} parent=0 // loop_body
    %s18 = ssub.s32 %s13, 1
    %s19 = ssub.s32 %s13, 2
    %s20 = sadd.s32 %s13, 1
    %s21 = ssub.s32 %s13, %s20
    %p22 = scmp.eq.s32.totalorder %s21, 0
    %s24 = sadd.s32 %s23, 1
    %s25 = scalar_select %p22, %s23, %s24
    %p28 = pneg %p22
    %p29 = scmp.eq.s32.totalorder %s13, 1
    %p30 = por %p28, %p29
    %p31 = scmp.ne.s32.totalorder %s23, %s26
    %p32 = scmp.eq.s32.totalorder %s13, 0
    %p33 = por %p31, %p32
    %p34 = scmp.ne.s32.totalorder %s23, %s26
    %p35 = scmp.eq.s32.totalorder %s18, 1
    %p36 = por %p34, %p35
    %p37 = scmp.ne.s32.totalorder %s26, %s27
    %p38 = scmp.eq.s32.totalorder %s18, 0
    %p39 = por %p37, %p38
    %p40 = scmp.ne.s32.totalorder %s26, %s27
    %p41 = scmp.eq.s32.totalorder %s19, 1
    %p42 = por %p40, %p41
    %p44 = scmp.ne.s32.totalorder %s27, %s43
    %p45 = scmp.eq.s32.totalorder %s19, 0
    %p46 = por %p44, %p45
    %s47 = ssub.s32 %s13, %s20
    %p48 = scmp.eq.s32.totalorder %s47, 0
    %s50 = sadd.s32 %s49, 1
    %s51 = scalar_select %p48, %s49, %s50
    %p54 = pneg %p48
    %p55 = scmp.eq.s32.totalorder %s13, 1
    %p56 = por %p54, %p55
    %p57 = scmp.ne.s32.totalorder %s49, %s52
    %p58 = scmp.eq.s32.totalorder %s13, 0
    %p59 = por %p57, %p58
    %p60 = scmp.ne.s32.totalorder %s49, %s52
    %p61 = scmp.eq.s32.totalorder %s18, 1
    %p62 = por %p60, %p61
    %p63 = scmp.ne.s32.totalorder %s52, %s53
    %p64 = scmp.eq.s32.totalorder %s18, 0
    %p65 = por %p63, %p64
    %p66 = scmp.ne.s32.totalorder %s52, %s53
    %p67 = scmp.eq.s32.totalorder %s19, 1
    %p68 = por %p66, %p67
    %p70 = scmp.ne.s32.totalorder %s53, %s69
    %p71 = scmp.eq.s32.totalorder %s19, 0
    %p72 = por %p70, %p71
    %s73 = ssub.s32 %s13, %s20
    %p74 = scmp.eq.s32.totalorder %s73, 0
    %s76 = sadd.s32 %s75, 1
    %s77 = scalar_select %p74, %s75, %s76
    %p80 = pneg %p74
    %p81 = scmp.eq.s32.totalorder %s13, 1
    %p82 = por %p80, %p81
    %p83 = scmp.ne.s32.totalorder %s75, %s78
    %p84 = scmp.eq.s32.totalorder %s13, 0
    %p85 = por %p83, %p84
    %p86 = scmp.ne.s32.totalorder %s75, %s78
    %p87 = scmp.eq.s32.totalorder %s18, 1
    %p88 = por %p86, %p87
    %p89 = scmp.ne.s32.totalorder %s78, %s79
    %p90 = scmp.eq.s32.totalorder %s18, 0
    %p91 = por %p89, %p90
    %p92 = scmp.ne.s32.totalorder %s78, %s79
    %p93 = scmp.eq.s32.totalorder %s19, 1
    %p94 = por %p92, %p93
    %p96 = scmp.ne.s32.totalorder %s79, %s95
    %p97 = scmp.eq.s32.totalorder %s19, 0
    %p98 = por %p96, %p97
    %s99 = ssub.s32 %s13, %s20
    %p100 = scmp.eq.s32.totalorder %s99, 0
    %s102 = sadd.s32 %s101, 1
    %s103 = scalar_select %p100, %s101, %s102
    %p106 = pneg %p100
    %p107 = scmp.eq.s32.totalorder %s13, 1
    %p108 = por %p106, %p107
    %p109 = scmp.ne.s32.totalorder %s101, %s104
    %p110 = scmp.eq.s32.totalorder %s13, 0
    %p111 = por %p109, %p110
    %p112 = scmp.ne.s32.totalorder %s101, %s104
    %p113 = scmp.eq.s32.totalorder %s18, 1
    %p114 = por %p112, %p113
    %p115 = scmp.ne.s32.totalorder %s104, %s105
    %p116 = scmp.eq.s32.totalorder %s18, 0
    %p117 = por %p115, %p116
    %p118 = scmp.ne.s32.totalorder %s104, %s105
    %p119 = scmp.eq.s32.totalorder %s19, 1
    %p120 = por %p118, %p119
    %p122 = scmp.ne.s32.totalorder %s105, %s121
    %p123 = scmp.eq.s32.totalorder %s19, 0
    %p124 = por %p122, %p123
    %s125 = ssub.s32 %s13, %s20
    %p126 = scmp.eq.s32.totalorder %s125, 0
    %s128 = sadd.s32 %s127, 1
    %s129 = scalar_select %p126, %s127, %s128
    %p132 = pneg %p126
    %p133 = scmp.eq.s32.totalorder %s13, 1
    %p134 = por %p132, %p133
    %p135 = scmp.ne.s32.totalorder %s127, %s130
    %p136 = scmp.eq.s32.totalorder %s13, 0
    %p137 = por %p135, %p136
    %p138 = scmp.ne.s32.totalorder %s127, %s130
    %p139 = scmp.eq.s32.totalorder %s18, 1
    %p140 = por %p138, %p139
    %p141 = scmp.ne.s32.totalorder %s130, %s131
    %p142 = scmp.eq.s32.totalorder %s18, 0
    %p143 = por %p141, %p142
    %p144 = scmp.ne.s32.totalorder %s130, %s131
    %p145 = scmp.eq.s32.totalorder %s19, 1
    %p146 = por %p144, %p145
    %p148 = scmp.ne.s32.totalorder %s131, %s147
    %p149 = scmp.eq.s32.totalorder %s19, 0
    %p150 = por %p148, %p149
    %s152 = sadd.s32 %s151, 1
    %p155 = scmp.eq.s32.totalorder %s13, 1
    %p156 = scmp.ne.s32.totalorder %s151, %s153
    %p157 = scmp.eq.s32.totalorder %s13, 0
    %p158 = por %p156, %p157
    %p159 = scmp.ne.s32.totalorder %s151, %s153
    %p160 = scmp.eq.s32.totalorder %s18, 1
    %p161 = por %p159, %p160
    %p162 = scmp.ne.s32.totalorder %s153, %s154
    %p163 = scmp.eq.s32.totalorder %s18, 0
    %p164 = por %p162, %p163
    %p165 = scmp.ne.s32.totalorder %s153, %s154
    %p166 = scmp.eq.s32.totalorder %s19, 1
    %p167 = por %p165, %p166
    %p169 = scmp.ne.s32.totalorder %s154, %s168
    %p170 = scmp.eq.s32.totalorder %s19, 0
    %p171 = por %p169, %p170
    %s173 = sadd.s32 %s172, 1
    %p176 = scmp.eq.s32.totalorder %s13, 1
    %p177 = scmp.ne.s32.totalorder %s172, %s174
    %p178 = scmp.eq.s32.totalorder %s13, 0
    %p179 = por %p177, %p178
    %p180 = scmp.ne.s32.totalorder %s172, %s174
    %p181 = scmp.eq.s32.totalorder %s18, 1
    %p182 = por %p180, %p181
    %p183 = scmp.ne.s32.totalorder %s174, %s175
    %p184 = scmp.eq.s32.totalorder %s18, 0
    %p185 = por %p183, %p184
    %p186 = scmp.ne.s32.totalorder %s174, %s175
    %p187 = scmp.eq.s32.totalorder %s19, 1
    %p188 = por %p186, %p187
    %p190 = scmp.ne.s32.totalorder %s175, %s189
    %p191 = scmp.eq.s32.totalorder %s19, 0
    %p192 = por %p190, %p191
    %s193 = ssub.s32 %s13, %s20
    %p194 = scmp.eq.s32.totalorder %s193, 0
    %s196 = sadd.s32 %s195, 1
    %s197 = scalar_select %p194, %s195, %s196
    %p200 = pneg %p194
    %p201 = scmp.eq.s32.totalorder %s13, 1
    %p202 = por %p200, %p201
    %p203 = scmp.ne.s32.totalorder %s195, %s198
    %p204 = scmp.eq.s32.totalorder %s13, 0
    %p205 = por %p203, %p204
    %p206 = scmp.ne.s32.totalorder %s195, %s198
    %p207 = scmp.eq.s32.totalorder %s18, 1
    %p208 = por %p206, %p207
    %p209 = scmp.ne.s32.totalorder %s198, %s199
    %p210 = scmp.eq.s32.totalorder %s18, 0
    %p211 = por %p209, %p210
    %p212 = scmp.ne.s32.totalorder %s198, %s199
    %p213 = scmp.eq.s32.totalorder %s19, 1
    %p214 = por %p212, %p213
    %p216 = scmp.ne.s32.totalorder %s199, %s215
    %p217 = scmp.eq.s32.totalorder %s19, 0
    %p218 = por %p216, %p217
    %p219 = scmp.le.s32.totalorder 1, %s13
    %p220 = scmp.lt.s32.totalorder %s13, 3
    %p221 = pnand %p219, %p220
    %p222 = pneg %p221
    // Predicated region
    $region9: #{contextual_attention.1} parent=5 // pred_check
      _
    $region10: #{contextual_attention.1} parent=5 // pred_check_branch
      %224 = sbr.rel (%p221) target = $region12
    $region11: #{contextual_attention.1} parent=5 // pred_region
      %s225 = ssub.s32 %s13, 1
      // Predicated region
      $region13: #{contextual_attention.1} parent=11 // pred_check
        %p226 = pneg %p164
      $region14: #{contextual_attention.1} parent=11 // pred_check_branch
        %228 = sbr.rel (%p226) target = $region16
      $region15: #{contextual_attention.1} parent=11 // pred_region
        _
      $region16: #{contextual_attention.1} parent=11 // pred_fallthru
        _
      // Predicated region
      $region17: #{contextual_attention.1} parent=11 // pred_check
        %p229 = pneg %p185
      $region18: #{contextual_attention.1} parent=11 // pred_check_branch
        %231 = sbr.rel (%p229) target = $region20
      $region19: #{contextual_attention.1} parent=11 // pred_region
        _
      $region20: #{contextual_attention.1} parent=11 // pred_fallthru
        _
    $region12: #{contextual_attention.1} parent=5 // pred_fallthru
      _
    %p232 = scmp.lt.s32.totalorder %s13, 2
    // Predicated region
    $region21: #{contextual_attention.1} parent=5 // pred_check
      %p233 = pneg %p232
    $region22: #{contextual_attention.1} parent=5 // pred_check_branch
      %235 = sbr.rel (%p233) target = $region24
    $region23: #{contextual_attention.1} parent=5 // pred_region
      // Predicated region
      $region25: #{contextual_attention.1} parent=23 // pred_check
        %p236 = pneg %p33
      $region26: #{contextual_attention.1} parent=23 // pred_check_branch
        %238 = sbr.rel (%p236) target = $region28
      $region27: #{contextual_attention.1} parent=23 // pred_region
        %p239 = scmp.lt.s32.totalorder %s13, 1
        %s240 = scalar_select %p239, %s13, 1
        %s241 = smul.addr %s240, 8
        %s242 = smul.addr %s241, 8
        %s243 = scalar_lea.vmem %s0, %s242
      $region28: #{contextual_attention.1} parent=23 // pred_fallthru
        _
      // Predicated region
      $region29: #{contextual_attention.1} parent=23 // pred_check
        %p244 = pneg %p59
      $region30: #{contextual_attention.1} parent=23 // pred_check_branch
        %246 = sbr.rel (%p244) target = $region32
      $region31: #{contextual_attention.1} parent=23 // pred_region
        %p247 = scmp.lt.s32.totalorder %s13, 1
        %s248 = scalar_select %p247, %s13, 1
        %s249 = smul.addr %s248, 8
        %s250 = smul.addr %s249, 8
        %s251 = scalar_lea.vmem %s1, %s250
      $region32: #{contextual_attention.1} parent=23 // pred_fallthru
        _
      // Predicated region
      $region33: #{contextual_attention.1} parent=23 // pred_check
        %p252 = pneg %p85
      $region34: #{contextual_attention.1} parent=23 // pred_check_branch
        %254 = sbr.rel (%p252) target = $region36
      $region35: #{contextual_attention.1} parent=23 // pred_region
        %p255 = scmp.lt.s32.totalorder %s13, 1
        %s256 = scalar_select %p255, %s13, 1
        %s257 = smul.addr %s256, 8
        %s258 = smul.addr %s257, 8
        %s259 = scalar_lea.vmem %s2, %s258
      $region36: #{contextual_attention.1} parent=23 // pred_fallthru
        _
      // Predicated region
      $region37: #{contextual_attention.1} parent=23 // pred_check
        %p260 = pneg %p111
      $region38: #{contextual_attention.1} parent=23 // pred_check_branch
        %262 = sbr.rel (%p260) target = $region40
      $region39: #{contextual_attention.1} parent=23 // pred_region
        %p263 = scmp.lt.s32.totalorder %s13, 1
        %s264 = scalar_select %p263, %s13, 1
        %s265 = smul.addr %s264, 8
        %s266 = smul.addr %s265, 8
        %s267 = scalar_lea.vmem %s3, %s266
      $region40: #{contextual_attention.1} parent=23 // pred_fallthru
        _
      // Predicated region
      $region41: #{contextual_attention.1} parent=23 // pred_check
        %p268 = pneg %p137
      $region42: #{contextual_attention.1} parent=23 // pred_check_branch
        %270 = sbr.rel (%p268) target = $region44
      $region43: #{contextual_attention.1} parent=23 // pred_region
        %p271 = scmp.lt.s32.totalorder %s13, 1
        %s272 = scalar_select %p271, %s13, 1
        %s273 = smul.addr %s272, 8
        %s274 = smul.addr %s273, 4
        %s275 = scalar_lea.vmem %s4, %s274
      $region44: #{contextual_attention.1} parent=23 // pred_fallthru
        _
    $region24: #{contextual_attention.1} parent=5 // pred_fallthru
      _
    %p276 = scmp.le.s32.totalorder 1, %s13
    %p277 = scmp.lt.s32.totalorder %s13, 3
    %p278 = pnand %p276, %p277
    %p279 = pneg %p278
    // Predicated region
    $region45: #{contextual_attention.1} parent=5 // pred_check
      _
    $region46: #{contextual_attention.1} parent=5 // pred_check_branch
      %281 = sbr.rel (%p278) target = $region48
    $region47: #{contextual_attention.1} parent=5 // pred_region
      %s282 = ssub.s32 %s13, 1
      %p283 = scmp.lt.s32.totalorder %s18, 1
      %s284 = scalar_select %p283, %s18, 1
      %s285 = smul.addr %s284, 8
      %s286 = smul.addr %s285, 8
      %s287 = scalar_lea.vmem %s0, %s286
      %p288 = pneg %p39
      %p289 = pneg %p36
      %p290 = scmp.lt.s32.totalorder %s18, 1
      %s291 = scalar_select %p290, %s18, 1
      %s292 = smul.addr %s291, 8
      %s293 = smul.addr %s292, 8
      %s294 = scalar_lea.vmem %s1, %s293
      %p295 = pneg %p65
      %p296 = pneg %p62
      %p297 = scmp.lt.s32.totalorder %s18, 1
      %s298 = scalar_select %p297, %s18, 1
      %s299 = smul.addr %s298, 8
      %s300 = smul.addr %s299, 8
      %s301 = scalar_lea.vmem %s2, %s300
      %p302 = pneg %p91
      %p303 = pneg %p88
      %p304 = scmp.lt.s32.totalorder %s18, 1
      %s305 = scalar_select %p304, %s18, 1
      %s306 = smul.addr %s305, 8
      %s307 = smul.addr %s306, 8
      %s308 = scalar_lea.vmem %s3, %s307
      %p309 = pneg %p117
      %p310 = pneg %p114
      %p311 = scmp.lt.s32.totalorder %s18, 1
      %s312 = scalar_select %p311, %s18, 1
      %s313 = smul.addr %s312, 8
      %s314 = smul.addr %s313, 4
      %s315 = scalar_lea.vmem %s4, %s314
      %p316 = pneg %p143
      %p317 = pneg %p140
      %p318 = pneg %p164
      %p319 = pneg %p161
      %p320 = pneg %p185
      %p321 = pneg %p182
      %p322 = pneg %p211
      %p323 = pneg %p208
      %p324 = scmp.lt.s32.totalorder %s18, 1
      %s325 = scalar_select %p324, %s18, 1
      %s326 = smul.addr %s325, 8
      %s327 = smul.addr %s326, 8
      %s328 = scalar_lea.vmem %s7, %s327
      %p329 = scmp.lt.s32.totalorder %s18, 1
      %s330 = scalar_select %p329, %s18, 1
      %s331 = smul.addr %s330, 8
      %s332 = smul.addr %s331, 8
      %s333 = scalar_lea.vmem %s0, %s332
      %p334 = scmp.lt.s32.totalorder %s18, 1
      %s335 = scalar_select %p334, %s18, 1
      %s336 = smul.addr %s335, 8
      %s337 = smul.addr %s336, 8
      %s338 = scalar_lea.vmem %s1, %s337
      %p339 = scmp.lt.s32.totalorder %s18, 1
      %s340 = scalar_select %p339, %s18, 1
      %s341 = smul.addr %s340, 8
      %s342 = smul.addr %s341, 8
      %s343 = scalar_lea.vmem %s2, %s342
      %p344 = scmp.lt.s32.totalorder %s18, 1
      %s345 = scalar_select %p344, %s18, 1
      %s346 = smul.addr %s345, 8
      %s347 = smul.addr %s346, 8
      %s348 = scalar_lea.vmem %s3, %s347
      %p349 = scmp.lt.s32.totalorder %s18, 1
      %s350 = scalar_select %p349, %s18, 1
      %s351 = smul.addr %s350, 8
      %s352 = smul.addr %s351, 4
      %s353 = scalar_lea.vmem %s4, %s352
      %p354 = scmp.lt.s32.totalorder %s18, 1
      %s355 = scalar_select %p354, %s18, 1
      %s356 = smul.addr %s355, 8
      %s357 = smul.addr %s356, 8
      %s358 = scalar_lea.vmem %s7, %s357
      %v360 = vld [vmem:[%s333] sm:$0xff]
      %v361 = vld [vmem:[%s333 + $0x8] sm:$0xff]
      %v362 = vld [vmem:[%s333 + $0x10] sm:$0xff]
      %v363 = vld [vmem:[%s333 + $0x18] sm:$0xff]
      %v364 = vld [vmem:[%s333 + $0x20] sm:$0xff]
      %v365 = vld [vmem:[%s333 + $0x28] sm:$0xff]
      %v366 = vld [vmem:[%s333 + $0x30] sm:$0xff]
      %v367 = vld [vmem:[%s333 + $0x38] sm:$0xff]
      %v368 = vld [vmem:[%s338] sm:$0xff]
      %v369 = vld [vmem:[%s338 + $0x8] sm:$0xff]
      %v370 = vld [vmem:[%s338 + $0x10] sm:$0xff]
      %v371 = vld [vmem:[%s338 + $0x18] sm:$0xff]
      %v372 = vld [vmem:[%s338 + $0x20] sm:$0xff]
      %v373 = vld [vmem:[%s338 + $0x28] sm:$0xff]
      %v374 = vld [vmem:[%s338 + $0x30] sm:$0xff]
      %v375 = vld [vmem:[%s338 + $0x38] sm:$0xff]
      %376 = vmatprep.subr.mxu0 0.0
      %v377 = vand.u32 %v368, 4294901760
      %378 = vmatpush1.xpose.msra.mxu0 %v377
      %379 = vmatprep.subr.mxu0 0.0
      %v380 = vand.u32 %v369, 4294901760
      %381 = vmatpush1.xpose.msra.mxu0 %v380
      %382 = vmatprep.subr.mxu0 0.0
      %v383 = vand.u32 %v370, 4294901760
      %384 = vmatpush1.xpose.msra.mxu0 %v383
      %385 = vmatprep.subr.mxu0 0.0
      %v386 = vand.u32 %v371, 4294901760
      %387 = vmatpush1.xpose.msra.mxu0 %v386
      %388 = vmatprep.subr.mxu0 0.0
      %v389 = vand.u32 %v372, 4294901760
      %390 = vmatpush1.xpose.msra.mxu0 %v389
      %391 = vmatprep.subr.mxu0 0.0
      %v392 = vand.u32 %v373, 4294901760
      %393 = vmatpush1.xpose.msra.mxu0 %v392
      %394 = vmatprep.subr.mxu0 0.0
      %v395 = vand.u32 %v374, 4294901760
      %396 = vmatpush1.xpose.msra.mxu0 %v395
      %397 = vmatprep.subr.mxu0 0.0
      %v398 = vand.u32 %v375, 4294901760
      %399 = vmatpush1.xpose.msra.mxu0 %v398
      %400 = vmatprep.subr.mxu0 0.0
      %401 = vmatpush1.xpose.msra.mxu0 0.0
      %402 = vmatprep.subr.mxu0 0.0
      %403 = vmatpush1.xpose.msra.mxu0 0.0
      %404 = vmatprep.subr.mxu0 0.0
      %405 = vmatpush1.xpose.msra.mxu0 0.0
      %406 = vmatprep.subr.mxu0 0.0
      %407 = vmatpush1.xpose.msra.mxu0 0.0
      %408 = vmatprep.subr.mxu0 0.0
      %409 = vmatpush1.xpose.msra.mxu0 0.0
      %410 = vmatprep.subr.mxu0 0.0
      %411 = vmatpush1.xpose.msra.mxu0 0.0
      %412 = vmatprep.subr.mxu0 0.0
      %413 = vmatpush1.xpose.msra.mxu0 0.0
      %414 = vmatprep.subr.mxu0 0.0
      %415 = vmatpush1.xpose.msra.mxu0 0.0
      %416 = vmatprep.subr.mxu0 0.0
      %417 = vmatpush1.xpose.msra.mxu0 0.0
      %418 = vmatprep.subr.mxu0 0.0
      %419 = vmatpush1.xpose.msra.mxu0 0.0
      %420 = vmatprep.subr.mxu0 0.0
      %421 = vmatpush1.xpose.msra.mxu0 0.0
      %422 = vmatprep.subr.mxu0 0.0
      %423 = vmatpush1.xpose.msra.mxu0 0.0
      %424 = vmatprep.subr.mxu0 0.0
      %425 = vmatpush1.xpose.msra.mxu0 0.0
      %426 = vmatprep.subr.mxu0 0.0
      %427 = vmatpush1.xpose.msra.mxu0 0.0
      %428 = vmatprep.subr.mxu0 0.0
      %429 = vmatpush1.xpose.msra.mxu0 0.0
      %430 = vmatprep.subr.mxu0 0.0
      %431 = vmatpush1.xpose.msra.mxu0 0.0
      %432 = vmatprep.subr.mxu0 0.0
      %433 = vmatpush1.xpose.msra.mxu0 0.0
      %434 = vmatprep.subr.mxu0 0.0
      %435 = vmatpush1.xpose.msra.mxu0 0.0
      %436 = vmatprep.subr.mxu0 0.0
      %437 = vmatpush1.xpose.msra.mxu0 0.0
      %438 = vmatprep.subr.mxu0 0.0
      %439 = vmatpush1.xpose.msra.mxu0 0.0
      %440 = vmatprep.subr.mxu0 0.0
      %441 = vmatpush1.xpose.msra.mxu0 0.0
      %442 = vmatprep.subr.mxu0 0.0
      %443 = vmatpush1.xpose.msra.mxu0 0.0
      %444 = vmatprep.subr.mxu0 0.0
      %445 = vmatpush1.xpose.msra.mxu0 0.0
      %446 = vmatprep.subr.mxu0 0.0
      %447 = vmatpush1.xpose.msra.mxu0 0.0
      %448 = vmatprep.mubr.f32.mxu0 0.0
      %v449 = vand.u32 %v360, 4294901760
      %v450 = vsub.f32 %v360, %v449
      %v451 = vand.u32 %v450, 4294901760
      %v452 = vsub.f32 %v450, %v451
      %v453 = vand.u32 %v452, 4294901760
      %454 = vmatmul.mubr.f32.gmra.mrb[0].mxu0 %v453
      %v455 = vpop.f32.mrb[0].mxu0
      %v456 = vadd.f32 0.0, %v455
      %v457 = vpop.f32.mrb[0].mxu0
      %458 = vmatprep.mubr.f32.mxu0 0.0
      %v459 = vand.u32 %v361, 4294901760
      %v460 = vsub.f32 %v361, %v459
      %v461 = vand.u32 %v460, 4294901760
      %v462 = vsub.f32 %v460, %v461
      %v463 = vand.u32 %v462, 4294901760
      %464 = vmatmul.mubr.f32.gmra.mrb[0].mxu0 %v463
      %v465 = vpop.f32.mrb[0].mxu0
      %v466 = vadd.f32 0.0, %v465
      %v467 = vpop.f32.mrb[0].mxu0
      %468 = vmatprep.mubr.f32.mxu0 0.0
      %v469 = vand.u32 %v362, 4294901760
      %v470 = vsub.f32 %v362, %v469
      %v471 = vand.u32 %v470, 4294901760
      %v472 = vsub.f32 %v470, %v471
      %v473 = vand.u32 %v472, 4294901760
      %474 = vmatmul.mubr.f32.gmra.mrb[0].mxu0 %v473
      %v475 = vpop.f32.mrb[0].mxu0
      %v476 = vadd.f32 0.0, %v475
      %v477 = vpop.f32.mrb[0].mxu0
      %478 = vmatprep.mubr.f32.mxu0 0.0
      %v479 = vand.u32 %v363, 4294901760
      %v480 = vsub.f32 %v363, %v479
      %v481 = vand.u32 %v480, 4294901760
      %v482 = vsub.f32 %v480, %v481
      %v483 = vand.u32 %v482, 4294901760
      %484 = vmatmul.mubr.f32.gmra.mrb[0].mxu0 %v483
      %v485 = vpop.f32.mrb[0].mxu0
      %v486 = vadd.f32 0.0, %v485
      %v487 = vpop.f32.mrb[0].mxu0
      %488 = vmatprep.mubr.f32.mxu0 0.0
      %v489 = vand.u32 %v364, 4294901760
      %v490 = vsub.f32 %v364, %v489
      %v491 = vand.u32 %v490, 4294901760
      %v492 = vsub.f32 %v490, %v491
      %v493 = vand.u32 %v492, 4294901760
      %494 = vmatmul.mubr.f32.gmra.mrb[0].mxu0 %v493
      %v495 = vpop.f32.mrb[0].mxu0
      %v496 = vadd.f32 0.0, %v495
      %v497 = vpop.f32.mrb[0].mxu0
      %498 = vmatprep.mubr.f32.mxu0 0.0
      %v499 = vand.u32 %v365, 4294901760
      %v500 = vsub.f32 %v365, %v499
      %v501 = vand.u32 %v500, 4294901760
      %v502 = vsub.f32 %v500, %v501
      %v503 = vand.u32 %v502, 4294901760
      %504 = vmatmul.mubr.f32.gmra.mrb[0].mxu0 %v503
      %v505 = vpop.f32.mrb[0].mxu0
      %v506 = vadd.f32 0.0, %v505
      %v507 = vpop.f32.mrb[0].mxu0
      %508 = vmatprep.mubr.f32.mxu0 0.0
      %v509 = vand.u32 %v366, 4294901760
      %v510 = vsub.f32 %v366, %v509
      %v511 = vand.u32 %v510, 4294901760
      %v512 = vsub.f32 %v510, %v511
      %v513 = vand.u32 %v512, 4294901760
      %514 = vmatmul.mubr.f32.gmra.mrb[0].mxu0 %v513
      %v515 = vpop.f32.mrb[0].mxu0
      %v516 = vadd.f32 0.0, %v515
      %v517 = vpop.f32.mrb[0].mxu0
      %518 = vmatprep.mubr.f32.mxu0 0.0
      %v519 = vand.u32 %v367, 4294901760
      %v520 = vsub.f32 %v367, %v519
      %v521 = vand.u32 %v520, 4294901760
      %v522 = vsub.f32 %v520, %v521
      %v523 = vand.u32 %v522, 4294901760
      %524 = vmatmul.mubr.f32.gmra.mrb[0].mxu0 %v523
      %v525 = vpop.f32.mrb[0].mxu0
      %v526 = vadd.f32 0.0, %v525
      %v527 = vpop.f32.mrb[0].mxu0
      %528 = vdwg.mxu0
      %529 = vmatprep.subr.mxu0 0.0
      %v530 = vand.u32 %v368, 4294901760
      %v531 = vsub.f32 %v368, %v530
      %v532 = vand.u32 %v531, 4294901760
      %v533 = vsub.f32 %v531, %v532
      %v534 = vand.u32 %v533, 4294901760
      %535 = vmatpush1.xpose.msra.mxu0 %v534
      %536 = vmatprep.subr.mxu0 0.0
      %v537 = vand.u32 %v369, 4294901760
      %v538 = vsub.f32 %v369, %v537
      %v539 = vand.u32 %v538, 4294901760
      %v540 = vsub.f32 %v538, %v539
      %v541 = vand.u32 %v540, 4294901760
      %542 = vmatpush1.xpose.msra.mxu0 %v541
      %543 = vmatprep.subr.mxu0 0.0
      %v544 = vand.u32 %v370, 4294901760
      %v545 = vsub.f32 %v370, %v544
      %v546 = vand.u32 %v545, 4294901760
      %v547 = vsub.f32 %v545, %v546
      %v548 = vand.u32 %v547, 4294901760
      %549 = vmatpush1.xpose.msra.mxu0 %v548
      %550 = vmatprep.subr.mxu0 0.0
      %v551 = vand.u32 %v371, 4294901760
      %v552 = vsub.f32 %v371, %v551
      %v553 = vand.u32 %v552, 4294901760
      %v554 = vsub.f32 %v552, %v553
      %v555 = vand.u32 %v554, 4294901760
      %556 = vmatpush1.xpose.msra.mxu0 %v555
      %557 = vmatprep.subr.mxu0 0.0
      %v558 = vand.u32 %v372, 4294901760
      %v559 = vsub.f32 %v372, %v558
      %v560 = vand.u32 %v559, 4294901760
      %v561 = vsub.f32 %v559, %v560
      %v562 = vand.u32 %v561, 4294901760
      %563 = vmatpush1.xpose.msra.mxu0 %v562
      %564 = vmatprep.subr.mxu0 0.0
      %v565 = vand.u32 %v373, 4294901760
      %v566 = vsub.f32 %v373, %v565
      %v567 = vand.u32 %v566, 4294901760
      %v568 = vsub.f32 %v566, %v567
      %v569 = vand.u32 %v568, 4294901760
      %570 = vmatpush1.xpose.msra.mxu0 %v569
      %571 = vmatprep.subr.mxu0 0.0
      %v572 = vand.u32 %v374, 4294901760
      %v573 = vsub.f32 %v374, %v572
      %v574 = vand.u32 %v573, 4294901760
      %v575 = vsub.f32 %v573, %v574
      %v576 = vand.u32 %v575, 4294901760
      %577 = vmatpush1.xpose.msra.mxu0 %v576
      %578 = vmatprep.subr.mxu0 0.0
      %v579 = vand.u32 %v375, 4294901760
      %v580 = vsub.f32 %v375, %v579
      %v581 = vand.u32 %v580, 4294901760
      %v582 = vsub.f32 %v580, %v581
      %v583 = vand.u32 %v582, 4294901760
      %584 = vmatpush1.xpose.msra.mxu0 %v583
      %585 = vmatprep.subr.mxu0 0.0
      %586 = vmatpush1.xpose.msra.mxu0 0.0
      %587 = vmatprep.subr.mxu0 0.0
      %588 = vmatpush1.xpose.msra.mxu0 0.0
      %589 = vmatprep.subr.mxu0 0.0
      %590 = vmatpush1.xpose.msra.mxu0 0.0
      %591 = vmatprep.subr.mxu0 0.0
      %592 = vmatpush1.xpose.msra.mxu0 0.0
      %593 = vmatprep.subr.mxu0 0.0
      %594 = vmatpush1.xpose.msra.mxu0 0.0
      %595 = vmatprep.subr.mxu0 0.0
      %596 = vmatpush1.xpose.msra.mxu0 0.0
      %597 = vmatprep.subr.mxu0 0.0
      %598 = vmatpush1.xpose.msra.mxu0 0.0
      %599 = vmatprep.subr.mxu0 0.0
      %600 = vmatpush1.xpose.msra.mxu0 0.0
      %601 = vmatprep.subr.mxu0 0.0
      %602 = vmatpush1.xpose.msra.mxu0 0.0
      %603 = vmatprep.subr.mxu0 0.0
      %604 = vmatpush1.xpose.msra.mxu0 0.0
      %605 = vmatprep.subr.mxu0 0.0
      %606 = vmatpush1.xpose.msra.mxu0 0.0
      %607 = vmatprep.subr.mxu0 0.0
      %608 = vmatpush1.xpose.msra.mxu0 0.0
      %609 = vmatprep.subr.mxu0 0.0
      %610 = vmatpush1.xpose.msra.mxu0 0.0
      %611 = vmatprep.subr.mxu0 0.0
      %612 = vmatpush1.xpose.msra.mxu0 0.0
      %613 = vmatprep.subr.mxu0 0.0
      %614 = vmatpush1.xpose.msra.mxu0 0.0
      %615 = vmatprep.subr.mxu0 0.0
      %616 = vmatpush1.xpose.msra.mxu0 0.0
      %617 = vmatprep.subr.mxu0 0.0
      %618 = vmatpush1.xpose.msra.mxu0 0.0
      %619 = vmatprep.subr.mxu0 0.0
      %620 = vmatpush1.xpose.msra.mxu0 0.0
      %621 = vmatprep.subr.mxu0 0.0
      %622 = vmatpush1.xpose.msra.mxu0 0.0
      %623 = vmatprep.subr.mxu0 0.0
      %624 = vmatpush1.xpose.msra.mxu0 0.0
      %625 = vmatprep.subr.mxu0 0.0
      %626 = vmatpush1.xpose.msra.mxu0 0.0
      %627 = vmatprep.subr.mxu0 0.0
      %628 = vmatpush1.xpose.msra.mxu0 0.0
      %629 = vmatprep.subr.mxu0 0.0
      %630 = vmatpush1.xpose.msra.mxu0 0.0
      %631 = vmatprep.subr.mxu0 0.0
      %632 = vmatpush1.xpose.msra.mxu0 0.0
      %633 = vmatprep.mubr.f32.mxu0 0.0
      %v634 = vand.u32 %v360, 4294901760
      %635 = vmatmul.mubr.f32.gmra.mrb[0].mxu0 %v634
      %v636 = vpop.f32.mrb[0].mxu0
      %v637 = vadd.f32 %v456, %v636
      %v638 = vpop.f32.mrb[0].mxu0
      %639 = vmatprep.mubr.f32.mxu0 0.0
      %v640 = vand.u32 %v361, 4294901760
      %641 = vmatmul.mubr.f32.gmra.mrb[0].mxu0 %v640
      %v642 = vpop.f32.mrb[0].mxu0
      %v643 = vadd.f32 %v466, %v642
      %v644 = vpop.f32.mrb[0].mxu0
      %645 = vmatprep.mubr.f32.mxu0 0.0
      %v646 = vand.u32 %v362, 4294901760
      %647 = vmatmul.mubr.f32.gmra.mrb[0].mxu0 %v646
      %v648 = vpop.f32.mrb[0].mxu0
      %v649 = vadd.f32 %v476, %v648
      %v650 = vpop.f32.mrb[0].mxu0
      %651 = vmatprep.mubr.f32.mxu0 0.0
      %v652 = vand.u32 %v363, 4294901760
      %653 = vmatmul.mubr.f32.gmra.mrb[0].mxu0 %v652
      %v654 = vpop.f32.mrb[0].mxu0
      %v655 = vadd.f32 %v486, %v654
      %v656 = vpop.f32.mrb[0].mxu0
      %657 = vmatprep.mubr.f32.mxu0 0.0
      %v658 = vand.u32 %v364, 4294901760
      %659 = vmatmul.mubr.f32.gmra.mrb[0].mxu0 %v658
      %v660 = vpop.f32.mrb[0].mxu0
      %v661 = vadd.f32 %v496, %v660
      %v662 = vpop.f32.mrb[0].mxu0
      %663 = vmatprep.mubr.f32.mxu0 0.0
      %v664 = vand.u32 %v365, 4294901760
      %665 = vmatmul.mubr.f32.gmra.mrb[0].mxu0 %v664
      %v666 = vpop.f32.mrb[0].mxu0
      %v667 = vadd.f32 %v506, %v666
      %v668 = vpop.f32.mrb[0].mxu0
      %669 = vmatprep.mubr.f32.mxu0 0.0
      %v670 = vand.u32 %v366, 4294901760
      %671 = vmatmul.mubr.f32.gmra.mrb[0].mxu0 %v670
      %v672 = vpop.f32.mrb[0].mxu0
      %v673 = vadd.f32 %v516, %v672
      %v674 = vpop.f32.mrb[0].mxu0
      %675 = vmatprep.mubr.f32.mxu0 0.0
      %v676 = vand.u32 %v367, 4294901760
      %677 = vmatmul.mubr.f32.gmra.mrb[0].mxu0 %v676
      %v678 = vpop.f32.mrb[0].mxu0
      %v679 = vadd.f32 %v526, %v678
      %v680 = vpop.f32.mrb[0].mxu0
      %681 = vdwg.mxu0
      %682 = vmatprep.subr.mxu0 0.0
      %v683 = vand.u32 %v368, 4294901760
      %v684 = vsub.f32 %v368, %v683
      %685 = vmatpush1.xpose.msra.mxu0 %v684
      %686 = vmatprep.subr.mxu0 0.0
      %v687 = vand.u32 %v369, 4294901760
      %v688 = vsub.f32 %v369, %v687
      %689 = vmatpush1.xpose.msra.mxu0 %v688
      %690 = vmatprep.subr.mxu0 0.0
      %v691 = vand.u32 %v370, 4294901760
      %v692 = vsub.f32 %v370, %v691
      %693 = vmatpush1.xpose.msra.mxu0 %v692
      %694 = vmatprep.subr.mxu0 0.0
      %v695 = vand.u32 %v371, 4294901760
      %v696 = vsub.f32 %v371, %v695
      %697 = vmatpush1.xpose.msra.mxu0 %v696
      %698 = vmatprep.subr.mxu0 0.0
      %v699 = vand.u32 %v372, 4294901760
      %v700 = vsub.f32 %v372, %v699
      %701 = vmatpush1.xpose.msra.mxu0 %v700
      %702 = vmatprep.subr.mxu0 0.0
      %v703 = vand.u32 %v373, 4294901760
      %v704 = vsub.f32 %v373, %v703
      %705 = vmatpush1.xpose.msra.mxu0 %v704
      %706 = vmatprep.subr.mxu0 0.0
      %v707 = vand.u32 %v374, 4294901760
      %v708 = vsub.f32 %v374, %v707
      %709 = vmatpush1.xpose.msra.mxu0 %v708
      %710 = vmatprep.subr.mxu0 0.0
      %v711 = vand.u32 %v375, 4294901760
      %v712 = vsub.f32 %v375, %v711
      %713 = vmatpush1.xpose.msra.mxu0 %v712
      %714 = vmatprep.subr.mxu0 0.0
      %715 = vmatpush1.xpose.msra.mxu0 0.0
      %716 = vmatprep.subr.mxu0 0.0
      %717 = vmatpush1.xpose.msra.mxu0 0.0
      %718 = vmatprep.subr.mxu0 0.0
      %719 = vmatpush1.xpose.msra.mxu0 0.0
      %720 = vmatprep.subr.mxu0 0.0
      %721 = vmatpush1.xpose.msra.mxu0 0.0
      %722 = vmatprep.subr.mxu0 0.0
      %723 = vmatpush1.xpose.msra.mxu0 0.0
      %724 = vmatprep.subr.mxu0 0.0
      %725 = vmatpush1.xpose.msra.mxu0 0.0
      %726 = vmatprep.subr.mxu0 0.0
      %727 = vmatpush1.xpose.msra.mxu0 0.0
      %728 = vmatprep.subr.mxu0 0.0
      %729 = vmatpush1.xpose.msra.mxu0 0.0
      %730 = vmatprep.subr.mxu0 0.0
      %731 = vmatpush1.xpose.msra.mxu0 0.0
      %732 = vmatprep.subr.mxu0 0.0
      %733 = vmatpush1.xpose.msra.mxu0 0.0
      %734 = vmatprep.subr.mxu0 0.0
      %735 = vmatpush1.xpose.msra.mxu0 0.0
      %736 = vmatprep.subr.mxu0 0.0
      %737 = vmatpush1.xpose.msra.mxu0 0.0
      %738 = vmatprep.subr.mxu0 0.0
      %739 = vmatpush1.xpose.msra.mxu0 0.0
      %740 = vmatprep.subr.mxu0 0.0
      %741 = vmatpush1.xpose.msra.mxu0 0.0
      %742 = vmatprep.subr.mxu0 0.0
      %743 = vmatpush1.xpose.msra.mxu0 0.0
      %744 = vmatprep.subr.mxu0 0.0
      %745 = vmatpush1.xpose.msra.mxu0 0.0
      %746 = vmatprep.subr.mxu0 0.0
      %747 = vmatpush1.xpose.msra.mxu0 0.0
      %748 = vmatprep.subr.mxu0 0.0
      %749 = vmatpush1.xpose.msra.mxu0 0.0
      %750 = vmatprep.subr.mxu0 0.0
      %751 = vmatpush1.xpose.msra.mxu0 0.0
      %752 = vmatprep.subr.mxu0 0.0
      %753 = vmatpush1.xpose.msra.mxu0 0.0
      %754 = vmatprep.subr.mxu0 0.0
      %755 = vmatpush1.xpose.msra.mxu0 0.0
      %756 = vmatprep.subr.mxu0 0.0
      %757 = vmatpush1.xpose.msra.mxu0 0.0
      %758 = vmatprep.subr.mxu0 0.0
      %759 = vmatpush1.xpose.msra.mxu0 0.0
      %760 = vmatprep.subr.mxu0 0.0
      %761 = vmatpush1.xpose.msra.mxu0 0.0
      %762 = vmatprep.mubr.f32.mxu0 0.0
      %v763 = vand.u32 %v360, 4294901760
      %v764 = vsub.f32 %v360, %v763
      %765 = vmatmul.mubr.f32.gmra.mrb[0].mxu0 %v764
      %v766 = vpop.f32.mrb[0].mxu0
      %v767 = vadd.f32 %v637, %v766
      %v768 = vpop.f32.mrb[0].mxu0
      %769 = vmatprep.mubr.f32.mxu0 0.0
      %v770 = vand.u32 %v361, 4294901760
      %v771 = vsub.f32 %v361, %v770
      %772 = vmatmul.mubr.f32.gmra.mrb[0].mxu0 %v771
      %v773 = vpop.f32.mrb[0].mxu0
      %v774 = vadd.f32 %v643, %v773
      %v775 = vpop.f32.mrb[0].mxu0
      %776 = vmatprep.mubr.f32.mxu0 0.0
      %v777 = vand.u32 %v362, 4294901760
      %v778 = vsub.f32 %v362, %v777
      %779 = vmatmul.mubr.f32.gmra.mrb[0].mxu0 %v778
      %v780 = vpop.f32.mrb[0].mxu0
      %v781 = vadd.f32 %v649, %v780
      %v782 = vpop.f32.mrb[0].mxu0
      %783 = vmatprep.mubr.f32.mxu0 0.0
      %v784 = vand.u32 %v363, 4294901760
      %v785 = vsub.f32 %v363, %v784
      %786 = vmatmul.mubr.f32.gmra.mrb[0].mxu0 %v785
      %v787 = vpop.f32.mrb[0].mxu0
      %v788 = vadd.f32 %v655, %v787
      %v789 = vpop.f32.mrb[0].mxu0
      %790 = vmatprep.mubr.f32.mxu0 0.0
      %v791 = vand.u32 %v364, 4294901760
      %v792 = vsub.f32 %v364, %v791
      %793 = vmatmul.mubr.f32.gmra.mrb[0].mxu0 %v792
      %v794 = vpop.f32.mrb[0].mxu0
      %v795 = vadd.f32 %v661, %v794
      %v796 = vpop.f32.mrb[0].mxu0
      %797 = vmatprep.mubr.f32.mxu0 0.0
      %v798 = vand.u32 %v365, 4294901760
      %v799 = vsub.f32 %v365, %v798
      %800 = vmatmul.mubr.f32.gmra.mrb[0].mxu0 %v799
      %v801 = vpop.f32.mrb[0].mxu0
      %v802 = vadd.f32 %v667, %v801
      %v803 = vpop.f32.mrb[0].mxu0
      %804 = vmatprep.mubr.f32.mxu0 0.0
      %v805 = vand.u32 %v366, 4294901760
      %v806 = vsub.f32 %v366, %v805
      %807 = vmatmul.mubr.f32.gmra.mrb[0].mxu0 %v806
      %v808 = vpop.f32.mrb[0].mxu0
      %v809 = vadd.f32 %v673, %v808
      %v810 = vpop.f32.mrb[0].mxu0
      %811 = vmatprep.mubr.f32.mxu0 0.0
      %v812 = vand.u32 %v367, 4294901760
      %v813 = vsub.f32 %v367, %v812
      %814 = vmatmul.mubr.f32.gmra.mrb[0].mxu0 %v813
      %v815 = vpop.f32.mrb[0].mxu0
      %v816 = vadd.f32 %v679, %v815
      %v817 = vpop.f32.mrb[0].mxu0
      %818 = vdwg.mxu0
      %819 = vmatprep.subr.mxu0 0.0
      %v820 = vand.u32 %v368, 4294901760
      %821 = vmatpush1.xpose.msra.mxu0 %v820
      %822 = vmatprep.subr.mxu0 0.0
      %v823 = vand.u32 %v369, 4294901760
      %824 = vmatpush1.xpose.msra.mxu0 %v823
      %825 = vmatprep.subr.mxu0 0.0
      %v826 = vand.u32 %v370, 4294901760
      %827 = vmatpush1.xpose.msra.mxu0 %v826
      %828 = vmatprep.subr.mxu0 0.0
      %v829 = vand.u32 %v371, 4294901760
      %830 = vmatpush1.xpose.msra.mxu0 %v829
      %831 = vmatprep.subr.mxu0 0.0
      %v832 = vand.u32 %v372, 4294901760
      %833 = vmatpush1.xpose.msra.mxu0 %v832
      %834 = vmatprep.subr.mxu0 0.0
      %v835 = vand.u32 %v373, 4294901760
      %836 = vmatpush1.xpose.msra.mxu0 %v835
      %837 = vmatprep.subr.mxu0 0.0
      %v838 = vand.u32 %v374, 4294901760
      %839 = vmatpush1.xpose.msra.mxu0 %v838
      %840 = vmatprep.subr.mxu0 0.0
      %v841 = vand.u32 %v375, 4294901760
      %842 = vmatpush1.xpose.msra.mxu0 %v841
      %843 = vmatprep.subr.mxu0 0.0
      %844 = vmatpush1.xpose.msra.mxu0 0.0
      %845 = vmatprep.subr.mxu0 0.0
      %846 = vmatpush1.xpose.msra.mxu0 0.0
      %847 = vmatprep.subr.mxu0 0.0
      %848 = vmatpush1.xpose.msra.mxu0 0.0
      %849 = vmatprep.subr.mxu0 0.0
      %850 = vmatpush1.xpose.msra.mxu0 0.0
      %851 = vmatprep.subr.mxu0 0.0
      %852 = vmatpush1.xpose.msra.mxu0 0.0
      %853 = vmatprep.subr.mxu0 0.0
      %854 = vmatpush1.xpose.msra.mxu0 0.0
      %855 = vmatprep.subr.mxu0 0.0
      %856 = vmatpush1.xpose.msra.mxu0 0.0
      %857 = vmatprep.subr.mxu0 0.0
      %858 = vmatpush1.xpose.msra.mxu0 0.0
      %859 = vmatprep.subr.mxu0 0.0
      %860 = vmatpush1.xpose.msra.mxu0 0.0
      %861 = vmatprep.subr.mxu0 0.0
      %862 = vmatpush1.xpose.msra.mxu0 0.0
      %863 = vmatprep.subr.mxu0 0.0
      %864 = vmatpush1.xpose.msra.mxu0 0.0
      %865 = vmatprep.subr.mxu0 0.0
      %866 = vmatpush1.xpose.msra.mxu0 0.0
      %867 = vmatprep.subr.mxu0 0.0
      %868 = vmatpush1.xpose.msra.mxu0 0.0
      %869 = vmatprep.subr.mxu0 0.0
      %870 = vmatpush1.xpose.msra.mxu0 0.0
      %871 = vmatprep.subr.mxu0 0.0
      %872 = vmatpush1.xpose.msra.mxu0 0.0
      %873 = vmatprep.subr.mxu0 0.0
      %874 = vmatpush1.xpose.msra.mxu0 0.0
      %875 = vmatprep.subr.mxu0 0.0
      %876 = vmatpush1.xpose.msra.mxu0 0.0
      %877 = vmatprep.subr.mxu0 0.0
      %878 = vmatpush1.xpose.msra.mxu0 0.0
      %879 = vmatprep.subr.mxu0 0.0
      %880 = vmatpush1.xpose.msra.mxu0 0.0
      %881 = vmatprep.subr.mxu0 0.0
      %882 = vmatpush1.xpose.msra.mxu0 0.0
      %883 = vmatprep.subr.mxu0 0.0
      %884 = vmatpush1.xpose.msra.mxu0 0.0
      %885 = vmatprep.subr.mxu0 0.0
      %886 = vmatpush1.xpose.msra.mxu0 0.0
      %887 = vmatprep.subr.mxu0 0.0
      %888 = vmatpush1.xpose.msra.mxu0 0.0
      %889 = vmatprep.subr.mxu0 0.0
      %890 = vmatpush1.xpose.msra.mxu0 0.0
      %891 = vmatprep.mubr.f32.mxu0 0.0
      %v892 = vand.u32 %v360, 4294901760
      %v893 = vsub.f32 %v360, %v892
      %v894 = vand.u32 %v893, 4294901760
      %895 = vmatmul.mubr.f32.gmra.mrb[0].mxu0 %v894
      %v896 = vpop.f32.mrb[0].mxu0
      %v897 = vadd.f32 %v767, %v896
      %v898 = vpop.f32.mrb[0].mxu0
      %899 = vmatprep.mubr.f32.mxu0 0.0
      %v900 = vand.u32 %v361, 4294901760
      %v901 = vsub.f32 %v361, %v900
      %v902 = vand.u32 %v901, 4294901760
      %903 = vmatmul.mubr.f32.gmra.mrb[0].mxu0 %v902
      %v904 = vpop.f32.mrb[0].mxu0
      %v905 = vadd.f32 %v774, %v904
      %v906 = vpop.f32.mrb[0].mxu0
      %907 = vmatprep.mubr.f32.mxu0 0.0
      %v908 = vand.u32 %v362, 4294901760
      %v909 = vsub.f32 %v362, %v908
      %v910 = vand.u32 %v909, 4294901760
      %911 = vmatmul.mubr.f32.gmra.mrb[0].mxu0 %v910
      %v912 = vpop.f32.mrb[0].mxu0
      %v913 = vadd.f32 %v781, %v912
      %v914 = vpop.f32.mrb[0].mxu0
      %915 = vmatprep.mubr.f32.mxu0 0.0
      %v916 = vand.u32 %v363, 4294901760
      %v917 = vsub.f32 %v363, %v916
      %v918 = vand.u32 %v917, 4294901760
      %919 = vmatmul.mubr.f32.gmra.mrb[0].mxu0 %v918
      %v920 = vpop.f32.mrb[0].mxu0
      %v921 = vadd.f32 %v788, %v920
      %v922 = vpop.f32.mrb[0].mxu0
      %923 = vmatprep.mubr.f32.mxu0 0.0
      %v924 = vand.u32 %v364, 4294901760
      %v925 = vsub.f32 %v364, %v924
      %v926 = vand.u32 %v925, 4294901760
      %927 = vmatmul.mubr.f32.gmra.mrb[0].mxu0 %v926
      %v928 = vpop.f32.mrb[0].mxu0
      %v929 = vadd.f32 %v795, %v928
      %v930 = vpop.f32.mrb[0].mxu0
      %931 = vmatprep.mubr.f32.mxu0 0.0
      %v932 = vand.u32 %v365, 4294901760
      %v933 = vsub.f32 %v365, %v932
      %v934 = vand.u32 %v933, 4294901760
      %935 = vmatmul.mubr.f32.gmra.mrb[0].mxu0 %v934
      %v936 = vpop.f32.mrb[0].mxu0
      %v937 = vadd.f32 %v802, %v936
      %v938 = vpop.f32.mrb[0].mxu0
      %939 = vmatprep.mubr.f32.mxu0 0.0
      %v940 = vand.u32 %v366, 4294901760
      %v941 = vsub.f32 %v366, %v940
      %v942 = vand.u32 %v941, 4294901760
      %943 = vmatmul.mubr.f32.gmra.mrb[0].mxu0 %v942
      %v944 = vpop.f32.mrb[0].mxu0
      %v945 = vadd.f32 %v809, %v944
      %v946 = vpop.f32.mrb[0].mxu0
      %947 = vmatprep.mubr.f32.mxu0 0.0
      %v948 = vand.u32 %v367, 4294901760
      %v949 = vsub.f32 %v367, %v948
      %v950 = vand.u32 %v949, 4294901760
      %951 = vmatmul.mubr.f32.gmra.mrb[0].mxu0 %v950
      %v952 = vpop.f32.mrb[0].mxu0
      %v953 = vadd.f32 %v816, %v952
      %v954 = vpop.f32.mrb[0].mxu0
      %955 = vdwg.mxu0
      %956 = vmatprep.subr.mxu0 0.0
      %v957 = vand.u32 %v368, 4294901760
      %v958 = vsub.f32 %v368, %v957
      %v959 = vand.u32 %v958, 4294901760
      %960 = vmatpush1.xpose.msra.mxu0 %v959
      %961 = vmatprep.subr.mxu0 0.0
      %v962 = vand.u32 %v369, 4294901760
      %v963 = vsub.f32 %v369, %v962
      %v964 = vand.u32 %v963, 4294901760
      %965 = vmatpush1.xpose.msra.mxu0 %v964
      %966 = vmatprep.subr.mxu0 0.0
      %v967 = vand.u32 %v370, 4294901760
      %v968 = vsub.f32 %v370, %v967
      %v969 = vand.u32 %v968, 4294901760
      %970 = vmatpush1.xpose.msra.mxu0 %v969
      %971 = vmatprep.subr.mxu0 0.0
      %v972 = vand.u32 %v371, 4294901760
      %v973 = vsub.f32 %v371, %v972
      %v974 = vand.u32 %v973, 4294901760
      %975 = vmatpush1.xpose.msra.mxu0 %v974
      %976 = vmatprep.subr.mxu0 0.0
      %v977 = vand.u32 %v372, 4294901760
      %v978 = vsub.f32 %v372, %v977
      %v979 = vand.u32 %v978, 4294901760
      %980 = vmatpush1.xpose.msra.mxu0 %v979
      %981 = vmatprep.subr.mxu0 0.0
      %v982 = vand.u32 %v373, 4294901760
      %v983 = vsub.f32 %v373, %v982
      %v984 = vand.u32 %v983, 4294901760
      %985 = vmatpush1.xpose.msra.mxu0 %v984
      %986 = vmatprep.subr.mxu0 0.0
      %v987 = vand.u32 %v374, 4294901760
      %v988 = vsub.f32 %v374, %v987
      %v989 = vand.u32 %v988, 4294901760
      %990 = vmatpush1.xpose.msra.mxu0 %v989
      %991 = vmatprep.subr.mxu0 0.0
      %v992 = vand.u32 %v375, 4294901760
      %v993 = vsub.f32 %v375, %v992
      %v994 = vand.u32 %v993, 4294901760
      %995 = vmatpush1.xpose.msra.mxu0 %v994
      %996 = vmatprep.subr.mxu0 0.0
      %997 = vmatpush1.xpose.msra.mxu0 0.0
      %998 = vmatprep.subr.mxu0 0.0
      %999 = vmatpush1.xpose.msra.mxu0 0.0
      %1000 = vmatprep.subr.mxu0 0.0
      %1001 = vmatpush1.xpose.msra.mxu0 0.0
      %1002 = vmatprep.subr.mxu0 0.0
      %1003 = vmatpush1.xpose.msra.mxu0 0.0
      %1004 = vmatprep.subr.mxu0 0.0
      %1005 = vmatpush1.xpose.msra.mxu0 0.0
      %1006 = vmatprep.subr.mxu0 0.0
      %1007 = vmatpush1.xpose.msra.mxu0 0.0
      %1008 = vmatprep.subr.mxu0 0.0
      %1009 = vmatpush1.xpose.msra.mxu0 0.0
      %1010 = vmatprep.subr.mxu0 0.0
      %1011 = vmatpush1.xpose.msra.mxu0 0.0
      %1012 = vmatprep.subr.mxu0 0.0
      %1013 = vmatpush1.xpose.msra.mxu0 0.0
      %1014 = vmatprep.subr.mxu0 0.0
      %1015 = vmatpush1.xpose.msra.mxu0 0.0
      %1016 = vmatprep.subr.mxu0 0.0
      %1017 = vmatpush1.xpose.msra.mxu0 0.0
      %1018 = vmatprep.subr.mxu0 0.0
      %1019 = vmatpush1.xpose.msra.mxu0 0.0
      %1020 = vmatprep.subr.mxu0 0.0
      %1021 = vmatpush1.xpose.msra.mxu0 0.0
      %1022 = vmatprep.subr.mxu0 0.0
      %1023 = vmatpush1.xpose.msra.mxu0 0.0
      %1024 = vmatprep.subr.mxu0 0.0
      %1025 = vmatpush1.xpose.msra.mxu0 0.0
      %1026 = vmatprep.subr.mxu0 0.0
      %1027 = vmatpush1.xpose.msra.mxu0 0.0
      %1028 = vmatprep.subr.mxu0 0.0
      %1029 = vmatpush1.xpose.msra.mxu0 0.0
      %1030 = vmatprep.subr.mxu0 0.0
      %1031 = vmatpush1.xpose.msra.mxu0 0.0
      %1032 = vmatprep.subr.mxu0 0.0
      %1033 = vmatpush1.xpose.msra.mxu0 0.0
      %1034 = vmatprep.subr.mxu0 0.0
      %1035 = vmatpush1.xpose.msra.mxu0 0.0
      %1036 = vmatprep.subr.mxu0 0.0
      %1037 = vmatpush1.xpose.msra.mxu0 0.0
      %1038 = vmatprep.subr.mxu0 0.0
      %1039 = vmatpush1.xpose.msra.mxu0 0.0
      %1040 = vmatprep.subr.mxu0 0.0
      %1041 = vmatpush1.xpose.msra.mxu0 0.0
      %1042 = vmatprep.subr.mxu0 0.0
      %1043 = vmatpush1.xpose.msra.mxu0 0.0
      %1044 = vmatprep.mubr.f32.mxu0 0.0
      %v1045 = vand.u32 %v360, 4294901760
      %1046 = vmatmul.mubr.f32.gmra.mrb[0].mxu0 %v1045
      %v1047 = vpop.f32.mrb[0].mxu0
      %v1048 = vadd.f32 %v897, %v1047
      %v1049 = vpop.f32.mrb[0].mxu0
      %1050 = vmatprep.mubr.f32.mxu0 0.0
      %v1051 = vand.u32 %v361, 4294901760
      %1052 = vmatmul.mubr.f32.gmra.mrb[0].mxu0 %v1051
      %v1053 = vpop.f32.mrb[0].mxu0
      %v1054 = vadd.f32 %v905, %v1053
      %v1055 = vpop.f32.mrb[0].mxu0
      %1056 = vmatprep.mubr.f32.mxu0 0.0
      %v1057 = vand.u32 %v362, 4294901760
      %1058 = vmatmul.mubr.f32.gmra.mrb[0].mxu0 %v1057
      %v1059 = vpop.f32.mrb[0].mxu0
      %v1060 = vadd.f32 %v913, %v1059
      %v1061 = vpop.f32.mrb[0].mxu0
      %1062 = vmatprep.mubr.f32.mxu0 0.0
      %v1063 = vand.u32 %v363, 4294901760
      %1064 = vmatmul.mubr.f32.gmra.mrb[0].mxu0 %v1063
      %v1065 = vpop.f32.mrb[0].mxu0
      %v1066 = vadd.f32 %v921, %v1065
      %v1067 = vpop.f32.mrb[0].mxu0
      %1068 = vmatprep.mubr.f32.mxu0 0.0
      %v1069 = vand.u32 %v364, 4294901760
      %1070 = vmatmul.mubr.f32.gmra.mrb[0].mxu0 %v1069
      %v1071 = vpop.f32.mrb[0].mxu0
      %v1072 = vadd.f32 %v929, %v1071
      %v1073 = vpop.f32.mrb[0].mxu0
      %1074 = vmatprep.mubr.f32.mxu0 0.0
      %v1075 = vand.u32 %v365, 4294901760
      %1076 = vmatmul.mubr.f32.gmra.mrb[0].mxu0 %v1075
      %v1077 = vpop.f32.mrb[0].mxu0
      %v1078 = vadd.f32 %v937, %v1077
      %v1079 = vpop.f32.mrb[0].mxu0
      %1080 = vmatprep.mubr.f32.mxu0 0.0
      %v1081 = vand.u32 %v366, 4294901760
      %1082 = vmatmul.mubr.f32.gmra.mrb[0].mxu0 %v1081
      %v1083 = vpop.f32.mrb[0].mxu0
      %v1084 = vadd.f32 %v945, %v1083
      %v1085 = vpop.f32.mrb[0].mxu0
      %1086 = vmatprep.mubr.f32.mxu0 0.0
      %v1087 = vand.u32 %v367, 4294901760
      %1088 = vmatmul.mubr.f32.gmra.mrb[0].mxu0 %v1087
      %v1089 = vpop.f32.mrb[0].mxu0
      %v1090 = vadd.f32 %v953, %v1089
      %v1091 = vpop.f32.mrb[0].mxu0
      %1092 = vdwg.mxu0
      %1093 = vmatprep.subr.mxu0 0.0
      %v1094 = vand.u32 %v368, 4294901760
      %1095 = vmatpush1.xpose.msra.mxu0 %v1094
      %1096 = vmatprep.subr.mxu0 0.0
      %v1097 = vand.u32 %v369, 4294901760
      %1098 = vmatpush1.xpose.msra.mxu0 %v1097
      %1099 = vmatprep.subr.mxu0 0.0
      %v1100 = vand.u32 %v370, 4294901760
      %1101 = vmatpush1.xpose.msra.mxu0 %v1100
      %1102 = vmatprep.subr.mxu0 0.0
      %v1103 = vand.u32 %v371, 4294901760
      %1104 = vmatpush1.xpose.msra.mxu0 %v1103
      %1105 = vmatprep.subr.mxu0 0.0
      %v1106 = vand.u32 %v372, 4294901760
      %1107 = vmatpush1.xpose.msra.mxu0 %v1106
      %1108 = vmatprep.subr.mxu0 0.0
      %v1109 = vand.u32 %v373, 4294901760
      %1110 = vmatpush1.xpose.msra.mxu0 %v1109
      %1111 = vmatprep.subr.mxu0 0.0
      %v1112 = vand.u32 %v374, 4294901760
      %1113 = vmatpush1.xpose.msra.mxu0 %v1112
      %1114 = vmatprep.subr.mxu0 0.0
      %v1115 = vand.u32 %v375, 4294901760
      %1116 = vmatpush1.xpose.msra.mxu0 %v1115
      %1117 = vmatprep.subr.mxu0 0.0
      %1118 = vmatpush1.xpose.msra.mxu0 0.0
      %1119 = vmatprep.subr.mxu0 0.0
      %1120 = vmatpush1.xpose.msra.mxu0 0.0
      %1121 = vmatprep.subr.mxu0 0.0
      %1122 = vmatpush1.xpose.msra.mxu0 0.0
      %1123 = vmatprep.subr.mxu0 0.0
      %1124 = vmatpush1.xpose.msra.mxu0 0.0
      %1125 = vmatprep.subr.mxu0 0.0
      %1126 = vmatpush1.xpose.msra.mxu0 0.0
      %1127 = vmatprep.subr.mxu0 0.0
      %1128 = vmatpush1.xpose.msra.mxu0 0.0
      %1129 = vmatprep.subr.mxu0 0.0
      %1130 = vmatpush1.xpose.msra.mxu0 0.0
      %1131 = vmatprep.subr.mxu0 0.0
      %1132 = vmatpush1.xpose.msra.mxu0 0.0
      %1133 = vmatprep.subr.mxu0 0.0
      %1134 = vmatpush1.xpose.msra.mxu0 0.0
      %1135 = vmatprep.subr.mxu0 0.0
      %1136 = vmatpush1.xpose.msra.mxu0 0.0
      %1137 = vmatprep.subr.mxu0 0.0
      %1138 = vmatpush1.xpose.msra.mxu0 0.0
      %1139 = vmatprep.subr.mxu0 0.0
      %1140 = vmatpush1.xpose.msra.mxu0 0.0
      %1141 = vmatprep.subr.mxu0 0.0
      %1142 = vmatpush1.xpose.msra.mxu0 0.0
      %1143 = vmatprep.subr.mxu0 0.0
      %1144 = vmatpush1.xpose.msra.mxu0 0.0
      %1145 = vmatprep.subr.mxu0 0.0
      %1146 = vmatpush1.xpose.msra.mxu0 0.0
      %1147 = vmatprep.subr.mxu0 0.0
      %1148 = vmatpush1.xpose.msra.mxu0 0.0
      %1149 = vmatprep.subr.mxu0 0.0
      %1150 = vmatpush1.xpose.msra.mxu0 0.0
      %1151 = vmatprep.subr.mxu0 0.0
      %1152 = vmatpush1.xpose.msra.mxu0 0.0
      %1153 = vmatprep.subr.mxu0 0.0
      %1154 = vmatpush1.xpose.msra.mxu0 0.0
      %1155 = vmatprep.subr.mxu0 0.0
      %1156 = vmatpush1.xpose.msra.mxu0 0.0
      %1157 = vmatprep.subr.mxu0 0.0
      %1158 = vmatpush1.xpose.msra.mxu0 0.0
      %1159 = vmatprep.subr.mxu0 0.0
      %1160 = vmatpush1.xpose.msra.mxu0 0.0
      %1161 = vmatprep.subr.mxu0 0.0
      %1162 = vmatpush1.xpose.msra.mxu0 0.0
      %1163 = vmatprep.subr.mxu0 0.0
      %1164 = vmatpush1.xpose.msra.mxu0 0.0
      %1165 = vmatprep.mubr.f32.mxu0 0.0
      %v1166 = vand.u32 %v360, 4294901760
      %1167 = vmatmul.mubr.f32.gmra.mrb[0].mxu0 %v1166
      %v1168 = vpop.f32.mrb[0].mxu0
      %v1169 = vadd.f32 %v1048, %v1168
      %v1170 = vpop.f32.mrb[0].mxu0
      %1171 = vmatprep.mubr.f32.mxu0 0.0
      %v1172 = vand.u32 %v361, 4294901760
      %1173 = vmatmul.mubr.f32.gmra.mrb[0].mxu0 %v1172
      %v1174 = vpop.f32.mrb[0].mxu0
      %v1175 = vadd.f32 %v1054, %v1174
      %v1176 = vpop.f32.mrb[0].mxu0
      %1177 = vmatprep.mubr.f32.mxu0 0.0
      %v1178 = vand.u32 %v362, 4294901760
      %1179 = vmatmul.mubr.f32.gmra.mrb[0].mxu0 %v1178
      %v1180 = vpop.f32.mrb[0].mxu0
      %v1181 = vadd.f32 %v1060, %v1180
      %v1182 = vpop.f32.mrb[0].mxu0
      %1183 = vmatprep.mubr.f32.mxu0 0.0
      %v1184 = vand.u32 %v363, 4294901760
      %1185 = vmatmul.mubr.f32.gmra.mrb[0].mxu0 %v1184
      %v1186 = vpop.f32.mrb[0].mxu0
      %v1187 = vadd.f32 %v1066, %v1186
      %v1188 = vpop.f32.mrb[0].mxu0
      %1189 = vmatprep.mubr.f32.mxu0 0.0
      %v1190 = vand.u32 %v364, 4294901760
      %1191 = vmatmul.mubr.f32.gmra.mrb[0].mxu0 %v1190
      %v1192 = vpop.f32.mrb[0].mxu0
      %v1193 = vadd.f32 %v1072, %v1192
      %v1194 = vpop.f32.mrb[0].mxu0
      %1195 = vmatprep.mubr.f32.mxu0 0.0
      %v1196 = vand.u32 %v365, 4294901760
      %1197 = vmatmul.mubr.f32.gmra.mrb[0].mxu0 %v1196
      %v1198 = vpop.f32.mrb[0].mxu0
      %v1199 = vadd.f32 %v1078, %v1198
      %v1200 = vpop.f32.mrb[0].mxu0
      %1201 = vmatprep.mubr.f32.mxu0 0.0
      %v1202 = vand.u32 %v366, 4294901760
      %1203 = vmatmul.mubr.f32.gmra.mrb[0].mxu0 %v1202
      %v1204 = vpop.f32.mrb[0].mxu0
      %v1205 = vadd.f32 %v1084, %v1204
      %v1206 = vpop.f32.mrb[0].mxu0
      %1207 = vmatprep.mubr.f32.mxu0 0.0
      %v1208 = vand.u32 %v367, 4294901760
      %1209 = vmatmul.mubr.f32.gmra.mrb[0].mxu0 %v1208
      %v1210 = vpop.f32.mrb[0].mxu0
      %v1211 = vadd.f32 %v1090, %v1210
      %v1212 = vpop.f32.mrb[0].mxu0
      %1213 = vdwg.mxu0
      %v1214 = vld [vmem:[%s343] sm:$0xff]
      %v1215 = vld [vmem:[%s343 + $0x8] sm:$0xff]
      %v1216 = vld [vmem:[%s343 + $0x10] sm:$0xff]
      %v1217 = vld [vmem:[%s343 + $0x18] sm:$0xff]
      %v1218 = vld [vmem:[%s343 + $0x20] sm:$0xff]
      %v1219 = vld [vmem:[%s343 + $0x28] sm:$0xff]
      %v1220 = vld [vmem:[%s343 + $0x30] sm:$0xff]
      %v1221 = vld [vmem:[%s343 + $0x38] sm:$0xff]
      %1223 = vset.pattern.permute.xlu0 0
      %1224 = vperm.xlu0 %1223, %v1214
      %v1225 = vpop.permute.xlu0 %1224
      %1228 = vset.pattern.permute.xlu0 0
      %1229 = vperm.xlu0 %1228, %v1215
      %v1230 = vpop.permute.xlu0 %1229
      %1233 = vset.pattern.permute.xlu0 0
      %1234 = vperm.xlu0 %1233, %v1216
      %v1235 = vpop.permute.xlu0 %1234
      %1238 = vset.pattern.permute.xlu0 0
      %1239 = vperm.xlu0 %1238, %v1217
      %v1240 = vpop.permute.xlu0 %1239
      %1243 = vset.pattern.permute.xlu0 0
      %1244 = vperm.xlu0 %1243, %v1218
      %v1245 = vpop.permute.xlu0 %1244
      %1248 = vset.pattern.permute.xlu0 0
      %1249 = vperm.xlu0 %1248, %v1219
      %v1250 = vpop.permute.xlu0 %1249
      %1253 = vset.pattern.permute.xlu0 0
      %1254 = vperm.xlu0 %1253, %v1220
      %v1255 = vpop.permute.xlu0 %1254
      %1258 = vset.pattern.permute.xlu0 0
      %1259 = vperm.xlu0 %1258, %v1221
      %v1260 = vpop.permute.xlu0 %1259
      %v1262 = vmul.f32 %v1169, %v1225
      %v1263 = vmul.f32 %v1175, %v1230
      %v1264 = vmul.f32 %v1181, %v1235
      %v1265 = vmul.f32 %v1187, %v1240
      %v1266 = vmul.f32 %v1193, %v1245
      %v1267 = vmul.f32 %v1199, %v1250
      %v1268 = vmul.f32 %v1205, %v1255
      %v1269 = vmul.f32 %v1211, %v1260
      %v1270 = vld [vmem:[%s5] sm:$0xff]
      %v1271 = vld [vmem:[%s5 + $0x8] sm:$0xff]
      %v1272 = vld [vmem:[%s5 + $0x10] sm:$0xff]
      %v1273 = vld [vmem:[%s5 + $0x18] sm:$0xff]
      %v1274 = vld [vmem:[%s5 + $0x20] sm:$0xff]
      %v1275 = vld [vmem:[%s5 + $0x28] sm:$0xff]
      %v1276 = vld [vmem:[%s5 + $0x30] sm:$0xff]
      %v1277 = vld [vmem:[%s5 + $0x38] sm:$0xff]
      %v1278 = vld [vmem:[%s6] sm:$0xff]
      %v1279 = vld [vmem:[%s6 + $0x8] sm:$0x3]
      %v1280 = vrot.slane %v1262, 7
      %v1281 = vrot.slane %v1263, 7
      %v1282 = vrot.slane %v1264, 7
      %v1283 = vrot.slane %v1265, 7
      %v1284 = vrot.slane %v1266, 7
      %v1285 = vrot.slane %v1267, 7
      %v1286 = vrot.slane %v1268, 7
      %v1287 = vrot.slane %v1269, 7
      %v1288 = vlaneseq
      %v1289 = vshrl.u32 %v1288, 7
      %vm1290 = vcmp.lt.s32.totalorder %v1289, 1
      %v1291 = vsel %vm1290, %v1286, %v1287
      %v1292 = vsel %vm1290, %v1285, %v1286
      %v1293 = vsel %vm1290, %v1284, %v1285
      %v1294 = vsel %vm1290, %v1283, %v1284
      %v1295 = vsel %vm1290, %v1282, %v1283
      %v1296 = vsel %vm1290, %v1281, %v1282
      %v1297 = vsel %vm1290, %v1280, %v1281
      %v1298 = vsel %vm1290, %v1287, %v1280
      %vm1299 = vcmask 1048064
      %1300 = vrot.lane.b32.xlu0 %v1298, 64
      %v1301 = vpop.permute.xlu0 %1300
      %v1302 = vsel %vm1299, %v1301, %v1298
      %1303 = vrot.lane.b32.xlu0 %v1297, 64
      %v1304 = vpop.permute.xlu0 %1303
      %v1305 = vsel %vm1299, %v1304, %v1297
      %1306 = vrot.lane.b32.xlu0 %v1296, 64
      %v1307 = vpop.permute.xlu0 %1306
      %v1308 = vsel %vm1299, %v1307, %v1296
      %1309 = vrot.lane.b32.xlu0 %v1295, 64
      %v1310 = vpop.permute.xlu0 %1309
      %v1311 = vsel %vm1299, %v1310, %v1295
      %1312 = vrot.lane.b32.xlu0 %v1294, 64
      %v1313 = vpop.permute.xlu0 %1312
      %v1314 = vsel %vm1299, %v1313, %v1294
      %1315 = vrot.lane.b32.xlu0 %v1293, 64
      %v1316 = vpop.permute.xlu0 %1315
      %v1317 = vsel %vm1299, %v1316, %v1293
      %1318 = vrot.lane.b32.xlu0 %v1292, 64
      %v1319 = vpop.permute.xlu0 %1318
      %v1320 = vsel %vm1299, %v1319, %v1292
      %1321 = vrot.lane.b32.xlu0 %v1291, 64
      %v1322 = vpop.permute.xlu0 %1321
      %v1323 = vsel %vm1299, %v1322, %v1291
      %1324 = vrot.lane.b32.xlu0 %v1302, 64
      %v1325 = vpop.permute.xlu0 %1324
      %1326 = vrot.lane.b32.xlu0 %v1305, 64
      %v1327 = vpop.permute.xlu0 %1326
      %1328 = vrot.lane.b32.xlu0 %v1308, 64
      %v1329 = vpop.permute.xlu0 %1328
      %1330 = vrot.lane.b32.xlu0 %v1311, 64
      %v1331 = vpop.permute.xlu0 %1330
      %1332 = vrot.lane.b32.xlu0 %v1314, 64
      %v1333 = vpop.permute.xlu0 %1332
      %1334 = vrot.lane.b32.xlu0 %v1317, 64
      %v1335 = vpop.permute.xlu0 %1334
      %1336 = vrot.lane.b32.xlu0 %v1320, 64
      %v1337 = vpop.permute.xlu0 %1336
      %1338 = vrot.lane.b32.xlu0 %v1323, 64
      %v1339 = vpop.permute.xlu0 %1338
      %v1340 = vsel %vm1299, %v1325, %v1298
      %v1341 = vsel %vm1299, %v1327, %v1297
      %v1342 = vsel %vm1299, %v1329, %v1296
      %v1343 = vsel %vm1299, %v1331, %v1295
      %v1344 = vsel %vm1299, %v1333, %v1294
      %v1345 = vsel %vm1299, %v1335, %v1293
      %v1346 = vsel %vm1299, %v1337, %v1292
      %v1347 = vsel %vm1299, %v1339, %v1291
      %1349 = vset.pattern.permute.xlu0 0
      %1350 = vperm.xlu0 %1349, %v1270
      %v1351 = vpop.permute.xlu0 %1350
      %1354 = vset.pattern.permute.xlu0 0
      %1355 = vperm.xlu0 %1354, %v1271
      %v1356 = vpop.permute.xlu0 %1355
      %1359 = vset.pattern.permute.xlu0 0
      %1360 = vperm.xlu0 %1359, %v1272
      %v1361 = vpop.permute.xlu0 %1360
      %1364 = vset.pattern.permute.xlu0 0
      %1365 = vperm.xlu0 %1364, %v1273
      %v1366 = vpop.permute.xlu0 %1365
      %1369 = vset.pattern.permute.xlu0 0
      %1370 = vperm.xlu0 %1369, %v1274
      %v1371 = vpop.permute.xlu0 %1370
      %1374 = vset.pattern.permute.xlu0 0
      %1375 = vperm.xlu0 %1374, %v1275
      %v1376 = vpop.permute.xlu0 %1375
      %1379 = vset.pattern.permute.xlu0 0
      %1380 = vperm.xlu0 %1379, %v1276
      %v1381 = vpop.permute.xlu0 %1380
      %1384 = vset.pattern.permute.xlu0 0
      %1385 = vperm.xlu0 %1384, %v1277
      %v1386 = vpop.permute.xlu0 %1385
      %v1388 = vmul.f32 %v1340, %v1351
      %v1389 = vmul.f32 %v1341, %v1356
      %v1390 = vmul.f32 %v1342, %v1361
      %v1391 = vmul.f32 %v1343, %v1366
      %v1392 = vmul.f32 %v1344, %v1371
      %v1393 = vmul.f32 %v1345, %v1376
      %v1394 = vmul.f32 %v1346, %v1381
      %v1395 = vmul.f32 %v1347, %v1386
      %v1396 = vlaneseq
      %v1397 = vshrl.u32 %v1396, 7
      %v1398 = vsub.s32 0, %v1397
      %v1399 = vrot.slane %v1278, %v1398
      %1401 = vrot.lane.b32.xlu0 %v1399, 63
      %v1402 = vpop.permute.xlu0 %1401
      %v1404 = vmul.f32 %v1388, %v1402
      %v1405 = vmul.f32 %v1389, %v1402
      %v1406 = vmul.f32 %v1390, %v1402
      %v1407 = vmul.f32 %v1391, %v1402
      %v1408 = vmul.f32 %v1392, %v1402
      %v1409 = vmul.f32 %v1393, %v1402
      %v1410 = vmul.f32 %v1394, %v1402
      %v1411 = vmul.f32 %v1395, %v1402
      %1420 = vrot.lane.b32.xlu0 %v1404, 65
      %v1421 = vpop.permute.xlu0 %1420
      %1422 = vrot.lane.b32.xlu0 %v1405, 65
      %v1423 = vpop.permute.xlu0 %1422
      %1424 = vrot.lane.b32.xlu0 %v1406, 65
      %v1425 = vpop.permute.xlu0 %1424
      %1426 = vrot.lane.b32.xlu0 %v1407, 65
      %v1427 = vpop.permute.xlu0 %1426
      %1428 = vrot.lane.b32.xlu0 %v1408, 65
      %v1429 = vpop.permute.xlu0 %1428
      %1430 = vrot.lane.b32.xlu0 %v1409, 65
      %v1431 = vpop.permute.xlu0 %1430
      %1432 = vrot.lane.b32.xlu0 %v1410, 65
      %v1433 = vpop.permute.xlu0 %1432
      %1434 = vrot.lane.b32.xlu0 %v1411, 65
      %v1435 = vpop.permute.xlu0 %1434
      %v1444 = vadd.f32 %v1262, %v1421
      %v1445 = vadd.f32 %v1263, %v1423
      %v1446 = vadd.f32 %v1264, %v1425
      %v1447 = vadd.f32 %v1265, %v1427
      %v1448 = vadd.f32 %v1266, %v1429
      %v1449 = vadd.f32 %v1267, %v1431
      %v1450 = vadd.f32 %v1268, %v1433
      %v1451 = vadd.f32 %v1269, %v1435
      %v1452 = vrot.slane %v1262, 1
      %v1453 = vrot.slane %v1263, 1
      %v1454 = vrot.slane %v1264, 1
      %v1455 = vrot.slane %v1265, 1
      %v1456 = vrot.slane %v1266, 1
      %v1457 = vrot.slane %v1267, 1
      %v1458 = vrot.slane %v1268, 1
      %v1459 = vrot.slane %v1269, 1
      %vm1460 = vcmp.lt.s32.totalorder %v1289, 7
      %v1461 = vsel %vm1460, %v1458, %v1459
      %v1462 = vsel %vm1460, %v1457, %v1458
      %v1463 = vsel %vm1460, %v1456, %v1457
      %v1464 = vsel %vm1460, %v1455, %v1456
      %v1465 = vsel %vm1460, %v1454, %v1455
      %v1466 = vsel %vm1460, %v1453, %v1454
      %v1467 = vsel %vm1460, %v1452, %v1453
      %v1468 = vsel %vm1460, %v1459, %v1452
      %1469 = vrot.lane.b32.xlu0 %v1467, 64
      %v1470 = vpop.permute.xlu0 %1469
      %v1471 = vsel %vm1299, %v1470, %v1467
      %1472 = vrot.lane.b32.xlu0 %v1466, 64
      %v1473 = vpop.permute.xlu0 %1472
      %v1474 = vsel %vm1299, %v1473, %v1466
      %1475 = vrot.lane.b32.xlu0 %v1465, 64
      %v1476 = vpop.permute.xlu0 %1475
      %v1477 = vsel %vm1299, %v1476, %v1465
      %1478 = vrot.lane.b32.xlu0 %v1464, 64
      %v1479 = vpop.permute.xlu0 %1478
      %v1480 = vsel %vm1299, %v1479, %v1464
      %1481 = vrot.lane.b32.xlu0 %v1463, 64
      %v1482 = vpop.permute.xlu0 %1481
      %v1483 = vsel %vm1299, %v1482, %v1463
      %1484 = vrot.lane.b32.xlu0 %v1462, 64
      %v1485 = vpop.permute.xlu0 %1484
      %v1486 = vsel %vm1299, %v1485, %v1462
      %1487 = vrot.lane.b32.xlu0 %v1461, 64
      %v1488 = vpop.permute.xlu0 %1487
      %v1489 = vsel %vm1299, %v1488, %v1461
      %1490 = vrot.lane.b32.xlu0 %v1468, 64
      %v1491 = vpop.permute.xlu0 %1490
      %v1492 = vsel %vm1299, %v1491, %v1468
      %1493 = vrot.lane.b32.xlu0 %v1471, 64
      %v1494 = vpop.permute.xlu0 %1493
      %1495 = vrot.lane.b32.xlu0 %v1474, 64
      %v1496 = vpop.permute.xlu0 %1495
      %1497 = vrot.lane.b32.xlu0 %v1477, 64
      %v1498 = vpop.permute.xlu0 %1497
      %1499 = vrot.lane.b32.xlu0 %v1480, 64
      %v1500 = vpop.permute.xlu0 %1499
      %1501 = vrot.lane.b32.xlu0 %v1483, 64
      %v1502 = vpop.permute.xlu0 %1501
      %1503 = vrot.lane.b32.xlu0 %v1486, 64
      %v1504 = vpop.permute.xlu0 %1503
      %1505 = vrot.lane.b32.xlu0 %v1489, 64
      %v1506 = vpop.permute.xlu0 %1505
      %1507 = vrot.lane.b32.xlu0 %v1492, 64
      %v1508 = vpop.permute.xlu0 %1507
      %v1509 = vsel %vm1299, %v1494, %v1467
      %v1510 = vsel %vm1299, %v1496, %v1466
      %v1511 = vsel %vm1299, %v1498, %v1465
      %v1512 = vsel %vm1299, %v1500, %v1464
      %v1513 = vsel %vm1299, %v1502, %v1463
      %v1514 = vsel %vm1299, %v1504, %v1462
      %v1515 = vsel %vm1299, %v1506, %v1461
      %v1516 = vsel %vm1299, %v1508, %v1468
      %1517 = vset.pattern.permute.xlu0 1
      %1518 = vperm.xlu0 %1517, %v1270
      %v1519 = vpop.permute.xlu0 %1518
      %1521 = vset.pattern.permute.xlu0 1
      %1522 = vperm.xlu0 %1521, %v1271
      %v1523 = vpop.permute.xlu0 %1522
      %1525 = vset.pattern.permute.xlu0 1
      %1526 = vperm.xlu0 %1525, %v1272
      %v1527 = vpop.permute.xlu0 %1526
      %1529 = vset.pattern.permute.xlu0 1
      %1530 = vperm.xlu0 %1529, %v1273
      %v1531 = vpop.permute.xlu0 %1530
      %1533 = vset.pattern.permute.xlu0 1
      %1534 = vperm.xlu0 %1533, %v1274
      %v1535 = vpop.permute.xlu0 %1534
      %1537 = vset.pattern.permute.xlu0 1
      %1538 = vperm.xlu0 %1537, %v1275
      %v1539 = vpop.permute.xlu0 %1538
      %1541 = vset.pattern.permute.xlu0 1
      %1542 = vperm.xlu0 %1541, %v1276
      %v1543 = vpop.permute.xlu0 %1542
      %1545 = vset.pattern.permute.xlu0 1
      %1546 = vperm.xlu0 %1545, %v1277
      %v1547 = vpop.permute.xlu0 %1546
      %v1549 = vmul.f32 %v1509, %v1519
      %v1550 = vmul.f32 %v1510, %v1523
      %v1551 = vmul.f32 %v1511, %v1527
      %v1552 = vmul.f32 %v1512, %v1531
      %v1553 = vmul.f32 %v1513, %v1535
      %v1554 = vmul.f32 %v1514, %v1539
      %v1555 = vmul.f32 %v1515, %v1543
      %v1556 = vmul.f32 %v1516, %v1547
      %v1557 = vlaneseq
      %v1558 = vshrl.u32 %v1557, 7
      %v1559 = vsub.s32 1, %v1558
      %v1560 = vrot.slane %v1278, %v1559
      %1562 = vrot.lane.b32.xlu0 %v1560, 1
      %v1563 = vpop.permute.xlu0 %1562
      %v1565 = vmul.f32 %v1549, %v1563
      %v1566 = vmul.f32 %v1550, %v1563
      %v1567 = vmul.f32 %v1551, %v1563
      %v1568 = vmul.f32 %v1552, %v1563
      %v1569 = vmul.f32 %v1553, %v1563
      %v1570 = vmul.f32 %v1554, %v1563
      %v1571 = vmul.f32 %v1555, %v1563
      %v1572 = vmul.f32 %v1556, %v1563
      %1581 = vrot.lane.b32.xlu0 %v1565, 127
      %v1582 = vpop.permute.xlu0 %1581
      %1583 = vrot.lane.b32.xlu0 %v1566, 127
      %v1584 = vpop.permute.xlu0 %1583
      %1585 = vrot.lane.b32.xlu0 %v1567, 127
      %v1586 = vpop.permute.xlu0 %1585
      %1587 = vrot.lane.b32.xlu0 %v1568, 127
      %v1588 = vpop.permute.xlu0 %1587
      %1589 = vrot.lane.b32.xlu0 %v1569, 127
      %v1590 = vpop.permute.xlu0 %1589
      %1591 = vrot.lane.b32.xlu0 %v1570, 127
      %v1592 = vpop.permute.xlu0 %1591
      %1593 = vrot.lane.b32.xlu0 %v1571, 127
      %v1594 = vpop.permute.xlu0 %1593
      %1595 = vrot.lane.b32.xlu0 %v1572, 127
      %v1596 = vpop.permute.xlu0 %1595
      %v1605 = vadd.f32 %v1444, %v1582
      %v1606 = vadd.f32 %v1445, %v1584
      %v1607 = vadd.f32 %v1446, %v1586
      %v1608 = vadd.f32 %v1447, %v1588
      %v1609 = vadd.f32 %v1448, %v1590
      %v1610 = vadd.f32 %v1449, %v1592
      %v1611 = vadd.f32 %v1450, %v1594
      %v1612 = vadd.f32 %v1451, %v1596
      %1613 = vrot.lane.b32.xlu0 %v1612, 64
      %v1614 = vpop.permute.xlu0 %1613
      %v1615 = vsel %vm1299, %v1614, %v1612
      %1616 = vrot.lane.b32.xlu0 %v1605, 64
      %v1617 = vpop.permute.xlu0 %1616
      %v1618 = vsel %vm1299, %v1617, %v1605
      %1619 = vrot.lane.b32.xlu0 %v1606, 64
      %v1620 = vpop.permute.xlu0 %1619
      %v1621 = vsel %vm1299, %v1620, %v1606
      %1622 = vrot.lane.b32.xlu0 %v1607, 64
      %v1623 = vpop.permute.xlu0 %1622
      %v1624 = vsel %vm1299, %v1623, %v1607
      %1625 = vrot.lane.b32.xlu0 %v1608, 64
      %v1626 = vpop.permute.xlu0 %1625
      %v1627 = vsel %vm1299, %v1626, %v1608
      %1628 = vrot.lane.b32.xlu0 %v1609, 64
      %v1629 = vpop.permute.xlu0 %1628
      %v1630 = vsel %vm1299, %v1629, %v1609
      %1631 = vrot.lane.b32.xlu0 %v1610, 64
      %v1632 = vpop.permute.xlu0 %1631
      %v1633 = vsel %vm1299, %v1632, %v1610
      %1634 = vrot.lane.b32.xlu0 %v1611, 64
      %v1635 = vpop.permute.xlu0 %1634
      %v1636 = vsel %vm1299, %v1635, %v1611
      %1637 = vrot.lane.b32.xlu0 %v1615, 64
      %v1638 = vpop.permute.xlu0 %1637
      %1639 = vrot.lane.b32.xlu0 %v1618, 64
      %v1640 = vpop.permute.xlu0 %1639
      %1641 = vrot.lane.b32.xlu0 %v1621, 64
      %v1642 = vpop.permute.xlu0 %1641
      %1643 = vrot.lane.b32.xlu0 %v1624, 64
      %v1644 = vpop.permute.xlu0 %1643
      %1645 = vrot.lane.b32.xlu0 %v1627, 64
      %v1646 = vpop.permute.xlu0 %1645
      %1647 = vrot.lane.b32.xlu0 %v1630, 64
      %v1648 = vpop.permute.xlu0 %1647
      %1649 = vrot.lane.b32.xlu0 %v1633, 64
      %v1650 = vpop.permute.xlu0 %1649
      %1651 = vrot.lane.b32.xlu0 %v1636, 64
      %v1652 = vpop.permute.xlu0 %1651
      %v1653 = vsel %vm1299, %v1638, %v1612
      %v1654 = vsel %vm1299, %v1640, %v1605
      %v1655 = vsel %vm1299, %v1642, %v1606
      %v1656 = vsel %vm1299, %v1644, %v1607
      %v1657 = vsel %vm1299, %v1646, %v1608
      %v1658 = vsel %vm1299, %v1648, %v1609
      %v1659 = vsel %vm1299, %v1650, %v1610
      %v1660 = vsel %vm1299, %v1652, %v1611
      %1661 = vset.pattern.permute.xlu0 2
      %1662 = vperm.xlu0 %1661, %v1270
      %v1663 = vpop.permute.xlu0 %1662
      %1665 = vset.pattern.permute.xlu0 2
      %1666 = vperm.xlu0 %1665, %v1271
      %v1667 = vpop.permute.xlu0 %1666
      %1669 = vset.pattern.permute.xlu0 2
      %1670 = vperm.xlu0 %1669, %v1272
      %v1671 = vpop.permute.xlu0 %1670
      %1673 = vset.pattern.permute.xlu0 2
      %1674 = vperm.xlu0 %1673, %v1273
      %v1675 = vpop.permute.xlu0 %1674
      %1677 = vset.pattern.permute.xlu0 2
      %1678 = vperm.xlu0 %1677, %v1274
      %v1679 = vpop.permute.xlu0 %1678
      %1681 = vset.pattern.permute.xlu0 2
      %1682 = vperm.xlu0 %1681, %v1275
      %v1683 = vpop.permute.xlu0 %1682
      %1685 = vset.pattern.permute.xlu0 2
      %1686 = vperm.xlu0 %1685, %v1276
      %v1687 = vpop.permute.xlu0 %1686
      %1689 = vset.pattern.permute.xlu0 2
      %1690 = vperm.xlu0 %1689, %v1277
      %v1691 = vpop.permute.xlu0 %1690
      %v1693 = vmul.f32 %v1653, %v1663
      %v1694 = vmul.f32 %v1654, %v1667
      %v1695 = vmul.f32 %v1655, %v1671
      %v1696 = vmul.f32 %v1656, %v1675
      %v1697 = vmul.f32 %v1657, %v1679
      %v1698 = vmul.f32 %v1658, %v1683
      %v1699 = vmul.f32 %v1659, %v1687
      %v1700 = vmul.f32 %v1660, %v1691
      %v1701 = vlaneseq
      %v1702 = vshrl.u32 %v1701, 7
      %v1703 = vsub.s32 2, %v1702
      %v1704 = vrot.slane %v1278, %v1703
      %1706 = vrot.lane.b32.xlu0 %v1704, 56
      %v1707 = vpop.permute.xlu0 %1706
      %v1709 = vmul.f32 %v1693, %v1707
      %v1710 = vmul.f32 %v1694, %v1707
      %v1711 = vmul.f32 %v1695, %v1707
      %v1712 = vmul.f32 %v1696, %v1707
      %v1713 = vmul.f32 %v1697, %v1707
      %v1714 = vmul.f32 %v1698, %v1707
      %v1715 = vmul.f32 %v1699, %v1707
      %v1716 = vmul.f32 %v1700, %v1707
      %1725 = vrot.lane.b32.xlu0 %v1709, 72
      %v1726 = vpop.permute.xlu0 %1725
      %1727 = vrot.lane.b32.xlu0 %v1710, 72
      %v1728 = vpop.permute.xlu0 %1727
      %1729 = vrot.lane.b32.xlu0 %v1711, 72
      %v1730 = vpop.permute.xlu0 %1729
      %1731 = vrot.lane.b32.xlu0 %v1712, 72
      %v1732 = vpop.permute.xlu0 %1731
      %1733 = vrot.lane.b32.xlu0 %v1713, 72
      %v1734 = vpop.permute.xlu0 %1733
      %1735 = vrot.lane.b32.xlu0 %v1714, 72
      %v1736 = vpop.permute.xlu0 %1735
      %1737 = vrot.lane.b32.xlu0 %v1715, 72
      %v1738 = vpop.permute.xlu0 %1737
      %1739 = vrot.lane.b32.xlu0 %v1716, 72
      %v1740 = vpop.permute.xlu0 %1739
      %v1749 = vadd.f32 %v1605, %v1726
      %v1750 = vadd.f32 %v1606, %v1728
      %v1751 = vadd.f32 %v1607, %v1730
      %v1752 = vadd.f32 %v1608, %v1732
      %v1753 = vadd.f32 %v1609, %v1734
      %v1754 = vadd.f32 %v1610, %v1736
      %v1755 = vadd.f32 %v1611, %v1738
      %v1756 = vadd.f32 %v1612, %v1740
      %1757 = vset.pattern.permute.xlu0 3
      %1758 = vperm.xlu0 %1757, %v1270
      %v1759 = vpop.permute.xlu0 %1758
      %1761 = vset.pattern.permute.xlu0 3
      %1762 = vperm.xlu0 %1761, %v1271
      %v1763 = vpop.permute.xlu0 %1762
      %1765 = vset.pattern.permute.xlu0 3
      %1766 = vperm.xlu0 %1765, %v1272
      %v1767 = vpop.permute.xlu0 %1766
      %1769 = vset.pattern.permute.xlu0 3
      %1770 = vperm.xlu0 %1769, %v1273
      %v1771 = vpop.permute.xlu0 %1770
      %1773 = vset.pattern.permute.xlu0 3
      %1774 = vperm.xlu0 %1773, %v1274
      %v1775 = vpop.permute.xlu0 %1774
      %1777 = vset.pattern.permute.xlu0 3
      %1778 = vperm.xlu0 %1777, %v1275
      %v1779 = vpop.permute.xlu0 %1778
      %1781 = vset.pattern.permute.xlu0 3
      %1782 = vperm.xlu0 %1781, %v1276
      %v1783 = vpop.permute.xlu0 %1782
      %1785 = vset.pattern.permute.xlu0 3
      %1786 = vperm.xlu0 %1785, %v1277
      %v1787 = vpop.permute.xlu0 %1786
      %v1789 = vmul.f32 %v1653, %v1759
      %v1790 = vmul.f32 %v1654, %v1763
      %v1791 = vmul.f32 %v1655, %v1767
      %v1792 = vmul.f32 %v1656, %v1771
      %v1793 = vmul.f32 %v1657, %v1775
      %v1794 = vmul.f32 %v1658, %v1779
      %v1795 = vmul.f32 %v1659, %v1783
      %v1796 = vmul.f32 %v1660, %v1787
      %v1797 = vlaneseq
      %v1798 = vshrl.u32 %v1797, 7
      %v1799 = vsub.s32 3, %v1798
      %v1800 = vrot.slane %v1278, %v1799
      %1802 = vrot.lane.b32.xlu0 %v1800, 55
      %v1803 = vpop.permute.xlu0 %1802
      %v1805 = vmul.f32 %v1789, %v1803
      %v1806 = vmul.f32 %v1790, %v1803
      %v1807 = vmul.f32 %v1791, %v1803
      %v1808 = vmul.f32 %v1792, %v1803
      %v1809 = vmul.f32 %v1793, %v1803
      %v1810 = vmul.f32 %v1794, %v1803
      %v1811 = vmul.f32 %v1795, %v1803
      %v1812 = vmul.f32 %v1796, %v1803
      %1821 = vrot.lane.b32.xlu0 %v1805, 73
      %v1822 = vpop.permute.xlu0 %1821
      %1823 = vrot.lane.b32.xlu0 %v1806, 73
      %v1824 = vpop.permute.xlu0 %1823
      %1825 = vrot.lane.b32.xlu0 %v1807, 73
      %v1826 = vpop.permute.xlu0 %1825
      %1827 = vrot.lane.b32.xlu0 %v1808, 73
      %v1828 = vpop.permute.xlu0 %1827
      %1829 = vrot.lane.b32.xlu0 %v1809, 73
      %v1830 = vpop.permute.xlu0 %1829
      %1831 = vrot.lane.b32.xlu0 %v1810, 73
      %v1832 = vpop.permute.xlu0 %1831
      %1833 = vrot.lane.b32.xlu0 %v1811, 73
      %v1834 = vpop.permute.xlu0 %1833
      %1835 = vrot.lane.b32.xlu0 %v1812, 73
      %v1836 = vpop.permute.xlu0 %1835
      %v1845 = vadd.f32 %v1749, %v1822
      %v1846 = vadd.f32 %v1750, %v1824
      %v1847 = vadd.f32 %v1751, %v1826
      %v1848 = vadd.f32 %v1752, %v1828
      %v1849 = vadd.f32 %v1753, %v1830
      %v1850 = vadd.f32 %v1754, %v1832
      %v1851 = vadd.f32 %v1755, %v1834
      %v1852 = vadd.f32 %v1756, %v1836
      %v1853 = vrot.slane %v1605, 7
      %v1854 = vrot.slane %v1606, 7
      %v1855 = vrot.slane %v1607, 7
      %v1856 = vrot.slane %v1608, 7
      %v1857 = vrot.slane %v1609, 7
      %v1858 = vrot.slane %v1610, 7
      %v1859 = vrot.slane %v1611, 7
      %v1860 = vrot.slane %v1612, 7
      %v1861 = vsel %vm1290, %v1859, %v1860
      %v1862 = vsel %vm1290, %v1858, %v1859
      %v1863 = vsel %vm1290, %v1857, %v1858
      %v1864 = vsel %vm1290, %v1856, %v1857
      %v1865 = vsel %vm1290, %v1855, %v1856
      %v1866 = vsel %vm1290, %v1854, %v1855
      %v1867 = vsel %vm1290, %v1853, %v1854
      %v1868 = vsel %vm1290, %v1860, %v1853
      %1869 = vrot.lane.b32.xlu0 %v1861, 64
      %v1870 = vpop.permute.xlu0 %1869
      %v1871 = vsel %vm1299, %v1870, %v1861
      %1872 = vrot.lane.b32.xlu0 %v1868, 64
      %v1873 = vpop.permute.xlu0 %1872
      %v1874 = vsel %vm1299, %v1873, %v1868
      %1875 = vrot.lane.b32.xlu0 %v1867, 64
      %v1876 = vpop.permute.xlu0 %1875
      %v1877 = vsel %vm1299, %v1876, %v1867
      %1878 = vrot.lane.b32.xlu0 %v1866, 64
      %v1879 = vpop.permute.xlu0 %1878
      %v1880 = vsel %vm1299, %v1879, %v1866
      %1881 = vrot.lane.b32.xlu0 %v1865, 64
      %v1882 = vpop.permute.xlu0 %1881
      %v1883 = vsel %vm1299, %v1882, %v1865
      %1884 = vrot.lane.b32.xlu0 %v1864, 64
      %v1885 = vpop.permute.xlu0 %1884
      %v1886 = vsel %vm1299, %v1885, %v1864
      %1887 = vrot.lane.b32.xlu0 %v1863, 64
      %v1888 = vpop.permute.xlu0 %1887
      %v1889 = vsel %vm1299, %v1888, %v1863
      %1890 = vrot.lane.b32.xlu0 %v1862, 64
      %v1891 = vpop.permute.xlu0 %1890
      %v1892 = vsel %vm1299, %v1891, %v1862
      %1893 = vrot.lane.b32.xlu0 %v1871, 64
      %v1894 = vpop.permute.xlu0 %1893
      %1895 = vrot.lane.b32.xlu0 %v1874, 64
      %v1896 = vpop.permute.xlu0 %1895
      %1897 = vrot.lane.b32.xlu0 %v1877, 64
      %v1898 = vpop.permute.xlu0 %1897
      %1899 = vrot.lane.b32.xlu0 %v1880, 64
      %v1900 = vpop.permute.xlu0 %1899
      %1901 = vrot.lane.b32.xlu0 %v1883, 64
      %v1902 = vpop.permute.xlu0 %1901
      %1903 = vrot.lane.b32.xlu0 %v1886, 64
      %v1904 = vpop.permute.xlu0 %1903
      %1905 = vrot.lane.b32.xlu0 %v1889, 64
      %v1906 = vpop.permute.xlu0 %1905
      %1907 = vrot.lane.b32.xlu0 %v1892, 64
      %v1908 = vpop.permute.xlu0 %1907
      %v1909 = vsel %vm1299, %v1894, %v1861
      %v1910 = vsel %vm1299, %v1896, %v1868
      %v1911 = vsel %vm1299, %v1898, %v1867
      %v1912 = vsel %vm1299, %v1900, %v1866
      %v1913 = vsel %vm1299, %v1902, %v1865
      %v1914 = vsel %vm1299, %v1904, %v1864
      %v1915 = vsel %vm1299, %v1906, %v1863
      %v1916 = vsel %vm1299, %v1908, %v1862
      %1917 = vset.pattern.permute.xlu0 4
      %1918 = vperm.xlu0 %1917, %v1270
      %v1919 = vpop.permute.xlu0 %1918
      %1921 = vset.pattern.permute.xlu0 4
      %1922 = vperm.xlu0 %1921, %v1271
      %v1923 = vpop.permute.xlu0 %1922
      %1925 = vset.pattern.permute.xlu0 4
      %1926 = vperm.xlu0 %1925, %v1272
      %v1927 = vpop.permute.xlu0 %1926
      %1929 = vset.pattern.permute.xlu0 4
      %1930 = vperm.xlu0 %1929, %v1273
      %v1931 = vpop.permute.xlu0 %1930
      %1933 = vset.pattern.permute.xlu0 4
      %1934 = vperm.xlu0 %1933, %v1274
      %v1935 = vpop.permute.xlu0 %1934
      %1937 = vset.pattern.permute.xlu0 4
      %1938 = vperm.xlu0 %1937, %v1275
      %v1939 = vpop.permute.xlu0 %1938
      %1941 = vset.pattern.permute.xlu0 4
      %1942 = vperm.xlu0 %1941, %v1276
      %v1943 = vpop.permute.xlu0 %1942
      %1945 = vset.pattern.permute.xlu0 4
      %1946 = vperm.xlu0 %1945, %v1277
      %v1947 = vpop.permute.xlu0 %1946
      %v1949 = vmul.f32 %v1909, %v1919
      %v1950 = vmul.f32 %v1910, %v1923
      %v1951 = vmul.f32 %v1911, %v1927
      %v1952 = vmul.f32 %v1912, %v1931
      %v1953 = vmul.f32 %v1913, %v1935
      %v1954 = vmul.f32 %v1914, %v1939
      %v1955 = vmul.f32 %v1915, %v1943
      %v1956 = vmul.f32 %v1916, %v1947
      %v1957 = vlaneseq
      %v1958 = vshrl.u32 %v1957, 7
      %v1959 = vsub.s32 4, %v1958
      %v1960 = vrot.slane %v1278, %v1959
      %1962 = vrot.lane.b32.xlu0 %v1960, 56
      %v1963 = vpop.permute.xlu0 %1962
      %v1965 = vmul.f32 %v1949, %v1963
      %v1966 = vmul.f32 %v1950, %v1963
      %v1967 = vmul.f32 %v1951, %v1963
      %v1968 = vmul.f32 %v1952, %v1963
      %v1969 = vmul.f32 %v1953, %v1963
      %v1970 = vmul.f32 %v1954, %v1963
      %v1971 = vmul.f32 %v1955, %v1963
      %v1972 = vmul.f32 %v1956, %v1963
      %1981 = vrot.lane.b32.xlu0 %v1965, 72
      %v1982 = vpop.permute.xlu0 %1981
      %1983 = vrot.lane.b32.xlu0 %v1966, 72
      %v1984 = vpop.permute.xlu0 %1983
      %1985 = vrot.lane.b32.xlu0 %v1967, 72
      %v1986 = vpop.permute.xlu0 %1985
      %1987 = vrot.lane.b32.xlu0 %v1968, 72
      %v1988 = vpop.permute.xlu0 %1987
      %1989 = vrot.lane.b32.xlu0 %v1969, 72
      %v1990 = vpop.permute.xlu0 %1989
      %1991 = vrot.lane.b32.xlu0 %v1970, 72
      %v1992 = vpop.permute.xlu0 %1991
      %1993 = vrot.lane.b32.xlu0 %v1971, 72
      %v1994 = vpop.permute.xlu0 %1993
      %1995 = vrot.lane.b32.xlu0 %v1972, 72
      %v1996 = vpop.permute.xlu0 %1995
      %v2005 = vadd.f32 %v1845, %v1982
      %v2006 = vadd.f32 %v1846, %v1984
      %v2007 = vadd.f32 %v1847, %v1986
      %v2008 = vadd.f32 %v1848, %v1988
      %v2009 = vadd.f32 %v1849, %v1990
      %v2010 = vadd.f32 %v1850, %v1992
      %v2011 = vadd.f32 %v1851, %v1994
      %v2012 = vadd.f32 %v1852, %v1996
      %2013 = vset.pattern.permute.xlu0 5
      %2014 = vperm.xlu0 %2013, %v1270
      %v2015 = vpop.permute.xlu0 %2014
      %2017 = vset.pattern.permute.xlu0 5
      %2018 = vperm.xlu0 %2017, %v1271
      %v2019 = vpop.permute.xlu0 %2018
      %2021 = vset.pattern.permute.xlu0 5
      %2022 = vperm.xlu0 %2021, %v1272
      %v2023 = vpop.permute.xlu0 %2022
      %2025 = vset.pattern.permute.xlu0 5
      %2026 = vperm.xlu0 %2025, %v1273
      %v2027 = vpop.permute.xlu0 %2026
      %2029 = vset.pattern.permute.xlu0 5
      %2030 = vperm.xlu0 %2029, %v1274
      %v2031 = vpop.permute.xlu0 %2030
      %2033 = vset.pattern.permute.xlu0 5
      %2034 = vperm.xlu0 %2033, %v1275
      %v2035 = vpop.permute.xlu0 %2034
      %2037 = vset.pattern.permute.xlu0 5
      %2038 = vperm.xlu0 %2037, %v1276
      %v2039 = vpop.permute.xlu0 %2038
      %2041 = vset.pattern.permute.xlu0 5
      %2042 = vperm.xlu0 %2041, %v1277
      %v2043 = vpop.permute.xlu0 %2042
      %v2045 = vmul.f32 %v1909, %v2015
      %v2046 = vmul.f32 %v1910, %v2019
      %v2047 = vmul.f32 %v1911, %v2023
      %v2048 = vmul.f32 %v1912, %v2027
      %v2049 = vmul.f32 %v1913, %v2031
      %v2050 = vmul.f32 %v1914, %v2035
      %v2051 = vmul.f32 %v1915, %v2039
      %v2052 = vmul.f32 %v1916, %v2043
      %v2053 = vlaneseq
      %v2054 = vshrl.u32 %v2053, 7
      %v2055 = vsub.s32 5, %v2054
      %v2056 = vrot.slane %v1278, %v2055
      %2058 = vrot.lane.b32.xlu0 %v2056, 55
      %v2059 = vpop.permute.xlu0 %2058
      %v2061 = vmul.f32 %v2045, %v2059
      %v2062 = vmul.f32 %v2046, %v2059
      %v2063 = vmul.f32 %v2047, %v2059
      %v2064 = vmul.f32 %v2048, %v2059
      %v2065 = vmul.f32 %v2049, %v2059
      %v2066 = vmul.f32 %v2050, %v2059
      %v2067 = vmul.f32 %v2051, %v2059
      %v2068 = vmul.f32 %v2052, %v2059
      %2077 = vrot.lane.b32.xlu0 %v2061, 73
      %v2078 = vpop.permute.xlu0 %2077
      %2079 = vrot.lane.b32.xlu0 %v2062, 73
      %v2080 = vpop.permute.xlu0 %2079
      %2081 = vrot.lane.b32.xlu0 %v2063, 73
      %v2082 = vpop.permute.xlu0 %2081
      %2083 = vrot.lane.b32.xlu0 %v2064, 73
      %v2084 = vpop.permute.xlu0 %2083
      %2085 = vrot.lane.b32.xlu0 %v2065, 73
      %v2086 = vpop.permute.xlu0 %2085
      %2087 = vrot.lane.b32.xlu0 %v2066, 73
      %v2088 = vpop.permute.xlu0 %2087
      %2089 = vrot.lane.b32.xlu0 %v2067, 73
      %v2090 = vpop.permute.xlu0 %2089
      %2091 = vrot.lane.b32.xlu0 %v2068, 73
      %v2092 = vpop.permute.xlu0 %2091
      %v2101 = vadd.f32 %v2005, %v2078
      %v2102 = vadd.f32 %v2006, %v2080
      %v2103 = vadd.f32 %v2007, %v2082
      %v2104 = vadd.f32 %v2008, %v2084
      %v2105 = vadd.f32 %v2009, %v2086
      %v2106 = vadd.f32 %v2010, %v2088
      %v2107 = vadd.f32 %v2011, %v2090
      %v2108 = vadd.f32 %v2012, %v2092
      %2109 = vset.pattern.permute.xlu0 6
      %2110 = vperm.xlu0 %2109, %v1270
      %v2111 = vpop.permute.xlu0 %2110
      %2113 = vset.pattern.permute.xlu0 6
      %2114 = vperm.xlu0 %2113, %v1271
      %v2115 = vpop.permute.xlu0 %2114
      %2117 = vset.pattern.permute.xlu0 6
      %2118 = vperm.xlu0 %2117, %v1272
      %v2119 = vpop.permute.xlu0 %2118
      %2121 = vset.pattern.permute.xlu0 6
      %2122 = vperm.xlu0 %2121, %v1273
      %v2123 = vpop.permute.xlu0 %2122
      %2125 = vset.pattern.permute.xlu0 6
      %2126 = vperm.xlu0 %2125, %v1274
      %v2127 = vpop.permute.xlu0 %2126
      %2129 = vset.pattern.permute.xlu0 6
      %2130 = vperm.xlu0 %2129, %v1275
      %v2131 = vpop.permute.xlu0 %2130
      %2133 = vset.pattern.permute.xlu0 6
      %2134 = vperm.xlu0 %2133, %v1276
      %v2135 = vpop.permute.xlu0 %2134
      %2137 = vset.pattern.permute.xlu0 6
      %2138 = vperm.xlu0 %2137, %v1277
      %v2139 = vpop.permute.xlu0 %2138
      %v2141 = vmul.f32 %v1655, %v2111
      %v2142 = vmul.f32 %v1656, %v2115
      %v2143 = vmul.f32 %v1657, %v2119
      %v2144 = vmul.f32 %v1658, %v2123
      %v2145 = vmul.f32 %v1659, %v2127
      %v2146 = vmul.f32 %v1660, %v2131
      %v2147 = vmul.f32 %v1653, %v2135
      %v2148 = vmul.f32 %v1654, %v2139
      %v2149 = vlaneseq
      %v2150 = vshrl.u32 %v2149, 7
      %v2151 = vsub.s32 6, %v2150
      %v2152 = vrot.slane %v1278, %v2151
      %2154 = vrot.lane.b32.xlu0 %v2152, 8
      %v2155 = vpop.permute.xlu0 %2154
      %v2157 = vmul.f32 %v2141, %v2155
      %v2158 = vmul.f32 %v2142, %v2155
      %v2159 = vmul.f32 %v2143, %v2155
      %v2160 = vmul.f32 %v2144, %v2155
      %v2161 = vmul.f32 %v2145, %v2155
      %v2162 = vmul.f32 %v2146, %v2155
      %v2163 = vmul.f32 %v2147, %v2155
      %v2164 = vmul.f32 %v2148, %v2155
      %2173 = vrot.lane.b32.xlu0 %v2157, 120
      %v2174 = vpop.permute.xlu0 %2173
      %2175 = vrot.lane.b32.xlu0 %v2158, 120
      %v2176 = vpop.permute.xlu0 %2175
      %2177 = vrot.lane.b32.xlu0 %v2159, 120
      %v2178 = vpop.permute.xlu0 %2177
      %2179 = vrot.lane.b32.xlu0 %v2160, 120
      %v2180 = vpop.permute.xlu0 %2179
      %2181 = vrot.lane.b32.xlu0 %v2161, 120
      %v2182 = vpop.permute.xlu0 %2181
      %2183 = vrot.lane.b32.xlu0 %v2162, 120
      %v2184 = vpop.permute.xlu0 %2183
      %2185 = vrot.lane.b32.xlu0 %v2163, 120
      %v2186 = vpop.permute.xlu0 %2185
      %2187 = vrot.lane.b32.xlu0 %v2164, 120
      %v2188 = vpop.permute.xlu0 %2187
      %v2197 = vadd.f32 %v2101, %v2174
      %v2198 = vadd.f32 %v2102, %v2176
      %v2199 = vadd.f32 %v2103, %v2178
      %v2200 = vadd.f32 %v2104, %v2180
      %v2201 = vadd.f32 %v2105, %v2182
      %v2202 = vadd.f32 %v2106, %v2184
      %v2203 = vadd.f32 %v2107, %v2186
      %v2204 = vadd.f32 %v2108, %v2188
      %2205 = vset.pattern.permute.xlu0 7
      %2206 = vperm.xlu0 %2205, %v1270
      %v2207 = vpop.permute.xlu0 %2206
      %2209 = vset.pattern.permute.xlu0 7
      %2210 = vperm.xlu0 %2209, %v1271
      %v2211 = vpop.permute.xlu0 %2210
      %2213 = vset.pattern.permute.xlu0 7
      %2214 = vperm.xlu0 %2213, %v1272
      %v2215 = vpop.permute.xlu0 %2214
      %2217 = vset.pattern.permute.xlu0 7
      %2218 = vperm.xlu0 %2217, %v1273
      %v2219 = vpop.permute.xlu0 %2218
      %2221 = vset.pattern.permute.xlu0 7
      %2222 = vperm.xlu0 %2221, %v1274
      %v2223 = vpop.permute.xlu0 %2222
      %2225 = vset.pattern.permute.xlu0 7
      %2226 = vperm.xlu0 %2225, %v1275
      %v2227 = vpop.permute.xlu0 %2226
      %2229 = vset.pattern.permute.xlu0 7
      %2230 = vperm.xlu0 %2229, %v1276
      %v2231 = vpop.permute.xlu0 %2230
      %2233 = vset.pattern.permute.xlu0 7
      %2234 = vperm.xlu0 %2233, %v1277
      %v2235 = vpop.permute.xlu0 %2234
      %v2237 = vmul.f32 %v1655, %v2207
      %v2238 = vmul.f32 %v1656, %v2211
      %v2239 = vmul.f32 %v1657, %v2215
      %v2240 = vmul.f32 %v1658, %v2219
      %v2241 = vmul.f32 %v1659, %v2223
      %v2242 = vmul.f32 %v1660, %v2227
      %v2243 = vmul.f32 %v1653, %v2231
      %v2244 = vmul.f32 %v1654, %v2235
      %v2245 = vlaneseq
      %v2246 = vshrl.u32 %v2245, 7
      %v2247 = vsub.s32 7, %v2246
      %v2248 = vrot.slane %v1278, %v2247
      %2250 = vrot.lane.b32.xlu0 %v2248, 9
      %v2251 = vpop.permute.xlu0 %2250
      %v2253 = vmul.f32 %v2237, %v2251
      %v2254 = vmul.f32 %v2238, %v2251
      %v2255 = vmul.f32 %v2239, %v2251
      %v2256 = vmul.f32 %v2240, %v2251
      %v2257 = vmul.f32 %v2241, %v2251
      %v2258 = vmul.f32 %v2242, %v2251
      %v2259 = vmul.f32 %v2243, %v2251
      %v2260 = vmul.f32 %v2244, %v2251
      %2269 = vrot.lane.b32.xlu0 %v2253, 119
      %v2270 = vpop.permute.xlu0 %2269
      %2271 = vrot.lane.b32.xlu0 %v2254, 119
      %v2272 = vpop.permute.xlu0 %2271
      %2273 = vrot.lane.b32.xlu0 %v2255, 119
      %v2274 = vpop.permute.xlu0 %2273
      %2275 = vrot.lane.b32.xlu0 %v2256, 119
      %v2276 = vpop.permute.xlu0 %2275
      %2277 = vrot.lane.b32.xlu0 %v2257, 119
      %v2278 = vpop.permute.xlu0 %2277
      %2279 = vrot.lane.b32.xlu0 %v2258, 119
      %v2280 = vpop.permute.xlu0 %2279
      %2281 = vrot.lane.b32.xlu0 %v2259, 119
      %v2282 = vpop.permute.xlu0 %2281
      %2283 = vrot.lane.b32.xlu0 %v2260, 119
      %v2284 = vpop.permute.xlu0 %2283
      %v2293 = vadd.f32 %v2197, %v2270
      %v2294 = vadd.f32 %v2198, %v2272
      %v2295 = vadd.f32 %v2199, %v2274
      %v2296 = vadd.f32 %v2200, %v2276
      %v2297 = vadd.f32 %v2201, %v2278
      %v2298 = vadd.f32 %v2202, %v2280
      %v2299 = vadd.f32 %v2203, %v2282
      %v2300 = vadd.f32 %v2204, %v2284
      %v2301 = vrot.slane %v1605, 1
      %v2302 = vrot.slane %v1606, 1
      %v2303 = vrot.slane %v1607, 1
      %v2304 = vrot.slane %v1608, 1
      %v2305 = vrot.slane %v1609, 1
      %v2306 = vrot.slane %v1610, 1
      %v2307 = vrot.slane %v1611, 1
      %v2308 = vrot.slane %v1612, 1
      %v2309 = vsel %vm1460, %v2307, %v2308
      %v2310 = vsel %vm1460, %v2306, %v2307
      %v2311 = vsel %vm1460, %v2305, %v2306
      %v2312 = vsel %vm1460, %v2304, %v2305
      %v2313 = vsel %vm1460, %v2303, %v2304
      %v2314 = vsel %vm1460, %v2302, %v2303
      %v2315 = vsel %vm1460, %v2301, %v2302
      %v2316 = vsel %vm1460, %v2308, %v2301
      %2317 = vrot.lane.b32.xlu0 %v2314, 64
      %v2318 = vpop.permute.xlu0 %2317
      %v2319 = vsel %vm1299, %v2318, %v2314
      %2320 = vrot.lane.b32.xlu0 %v2313, 64
      %v2321 = vpop.permute.xlu0 %2320
      %v2322 = vsel %vm1299, %v2321, %v2313
      %2323 = vrot.lane.b32.xlu0 %v2312, 64
      %v2324 = vpop.permute.xlu0 %2323
      %v2325 = vsel %vm1299, %v2324, %v2312
      %2326 = vrot.lane.b32.xlu0 %v2311, 64
      %v2327 = vpop.permute.xlu0 %2326
      %v2328 = vsel %vm1299, %v2327, %v2311
      %2329 = vrot.lane.b32.xlu0 %v2310, 64
      %v2330 = vpop.permute.xlu0 %2329
      %v2331 = vsel %vm1299, %v2330, %v2310
      %2332 = vrot.lane.b32.xlu0 %v2309, 64
      %v2333 = vpop.permute.xlu0 %2332
      %v2334 = vsel %vm1299, %v2333, %v2309
      %2335 = vrot.lane.b32.xlu0 %v2316, 64
      %v2336 = vpop.permute.xlu0 %2335
      %v2337 = vsel %vm1299, %v2336, %v2316
      %2338 = vrot.lane.b32.xlu0 %v2315, 64
      %v2339 = vpop.permute.xlu0 %2338
      %v2340 = vsel %vm1299, %v2339, %v2315
      %2341 = vrot.lane.b32.xlu0 %v2319, 64
      %v2342 = vpop.permute.xlu0 %2341
      %2343 = vrot.lane.b32.xlu0 %v2322, 64
      %v2344 = vpop.permute.xlu0 %2343
      %2345 = vrot.lane.b32.xlu0 %v2325, 64
      %v2346 = vpop.permute.xlu0 %2345
      %2347 = vrot.lane.b32.xlu0 %v2328, 64
      %v2348 = vpop.permute.xlu0 %2347
      %2349 = vrot.lane.b32.xlu0 %v2331, 64
      %v2350 = vpop.permute.xlu0 %2349
      %2351 = vrot.lane.b32.xlu0 %v2334, 64
      %v2352 = vpop.permute.xlu0 %2351
      %2353 = vrot.lane.b32.xlu0 %v2337, 64
      %v2354 = vpop.permute.xlu0 %2353
      %2355 = vrot.lane.b32.xlu0 %v2340, 64
      %v2356 = vpop.permute.xlu0 %2355
      %v2357 = vsel %vm1299, %v2342, %v2314
      %v2358 = vsel %vm1299, %v2344, %v2313
      %v2359 = vsel %vm1299, %v2346, %v2312
      %v2360 = vsel %vm1299, %v2348, %v2311
      %v2361 = vsel %vm1299, %v2350, %v2310
      %v2362 = vsel %vm1299, %v2352, %v2309
      %v2363 = vsel %vm1299, %v2354, %v2316
      %v2364 = vsel %vm1299, %v2356, %v2315
      %2365 = vset.pattern.permute.xlu0 8
      %2366 = vperm.xlu0 %2365, %v1270
      %v2367 = vpop.permute.xlu0 %2366
      %2369 = vset.pattern.permute.xlu0 8
      %2370 = vperm.xlu0 %2369, %v1271
      %v2371 = vpop.permute.xlu0 %2370
      %2373 = vset.pattern.permute.xlu0 8
      %2374 = vperm.xlu0 %2373, %v1272
      %v2375 = vpop.permute.xlu0 %2374
      %2377 = vset.pattern.permute.xlu0 8
      %2378 = vperm.xlu0 %2377, %v1273
      %v2379 = vpop.permute.xlu0 %2378
      %2381 = vset.pattern.permute.xlu0 8
      %2382 = vperm.xlu0 %2381, %v1274
      %v2383 = vpop.permute.xlu0 %2382
      %2385 = vset.pattern.permute.xlu0 8
      %2386 = vperm.xlu0 %2385, %v1275
      %v2387 = vpop.permute.xlu0 %2386
      %2389 = vset.pattern.permute.xlu0 8
      %2390 = vperm.xlu0 %2389, %v1276
      %v2391 = vpop.permute.xlu0 %2390
      %2393 = vset.pattern.permute.xlu0 8
      %2394 = vperm.xlu0 %2393, %v1277
      %v2395 = vpop.permute.xlu0 %2394
      %v2397 = vmul.f32 %v2357, %v2367
      %v2398 = vmul.f32 %v2358, %v2371
      %v2399 = vmul.f32 %v2359, %v2375
      %v2400 = vmul.f32 %v2360, %v2379
      %v2401 = vmul.f32 %v2361, %v2383
      %v2402 = vmul.f32 %v2362, %v2387
      %v2403 = vmul.f32 %v2363, %v2391
      %v2404 = vmul.f32 %v2364, %v2395
      %v2405 = vlaneseq
      %v2406 = vshrl.u32 %v2405, 7
      %v2407 = vsub.s32 0, %v2406
      %v2408 = vrot.slane %v1279, %v2407
      %2410 = vrot.lane.b32.xlu0 %v2408, 8
      %v2411 = vpop.permute.xlu0 %2410
      %v2413 = vmul.f32 %v2397, %v2411
      %v2414 = vmul.f32 %v2398, %v2411
      %v2415 = vmul.f32 %v2399, %v2411
      %v2416 = vmul.f32 %v2400, %v2411
      %v2417 = vmul.f32 %v2401, %v2411
      %v2418 = vmul.f32 %v2402, %v2411
      %v2419 = vmul.f32 %v2403, %v2411
      %v2420 = vmul.f32 %v2404, %v2411
      %2429 = vrot.lane.b32.xlu0 %v2413, 120
      %v2430 = vpop.permute.xlu0 %2429
      %2431 = vrot.lane.b32.xlu0 %v2414, 120
      %v2432 = vpop.permute.xlu0 %2431
      %2433 = vrot.lane.b32.xlu0 %v2415, 120
      %v2434 = vpop.permute.xlu0 %2433
      %2435 = vrot.lane.b32.xlu0 %v2416, 120
      %v2436 = vpop.permute.xlu0 %2435
      %2437 = vrot.lane.b32.xlu0 %v2417, 120
      %v2438 = vpop.permute.xlu0 %2437
      %2439 = vrot.lane.b32.xlu0 %v2418, 120
      %v2440 = vpop.permute.xlu0 %2439
      %2441 = vrot.lane.b32.xlu0 %v2419, 120
      %v2442 = vpop.permute.xlu0 %2441
      %2443 = vrot.lane.b32.xlu0 %v2420, 120
      %v2444 = vpop.permute.xlu0 %2443
      %v2453 = vadd.f32 %v2293, %v2430
      %v2454 = vadd.f32 %v2294, %v2432
      %v2455 = vadd.f32 %v2295, %v2434
      %v2456 = vadd.f32 %v2296, %v2436
      %v2457 = vadd.f32 %v2297, %v2438
      %v2458 = vadd.f32 %v2298, %v2440
      %v2459 = vadd.f32 %v2299, %v2442
      %v2460 = vadd.f32 %v2300, %v2444
      %2461 = vset.pattern.permute.xlu0 9
      %2462 = vperm.xlu0 %2461, %v1270
      %v2463 = vpop.permute.xlu0 %2462
      %2465 = vset.pattern.permute.xlu0 9
      %2466 = vperm.xlu0 %2465, %v1271
      %v2467 = vpop.permute.xlu0 %2466
      %2469 = vset.pattern.permute.xlu0 9
      %2470 = vperm.xlu0 %2469, %v1272
      %v2471 = vpop.permute.xlu0 %2470
      %2473 = vset.pattern.permute.xlu0 9
      %2474 = vperm.xlu0 %2473, %v1273
      %v2475 = vpop.permute.xlu0 %2474
      %2477 = vset.pattern.permute.xlu0 9
      %2478 = vperm.xlu0 %2477, %v1274
      %v2479 = vpop.permute.xlu0 %2478
      %2481 = vset.pattern.permute.xlu0 9
      %2482 = vperm.xlu0 %2481, %v1275
      %v2483 = vpop.permute.xlu0 %2482
      %2485 = vset.pattern.permute.xlu0 9
      %2486 = vperm.xlu0 %2485, %v1276
      %v2487 = vpop.permute.xlu0 %2486
      %2489 = vset.pattern.permute.xlu0 9
      %2490 = vperm.xlu0 %2489, %v1277
      %v2491 = vpop.permute.xlu0 %2490
      %v2493 = vmul.f32 %v2357, %v2463
      %v2494 = vmul.f32 %v2358, %v2467
      %v2495 = vmul.f32 %v2359, %v2471
      %v2496 = vmul.f32 %v2360, %v2475
      %v2497 = vmul.f32 %v2361, %v2479
      %v2498 = vmul.f32 %v2362, %v2483
      %v2499 = vmul.f32 %v2363, %v2487
      %v2500 = vmul.f32 %v2364, %v2491
      %v2501 = vlaneseq
      %v2502 = vshrl.u32 %v2501, 7
      %v2503 = vsub.s32 1, %v2502
      %v2504 = vrot.slane %v1279, %v2503
      %2506 = vrot.lane.b32.xlu0 %v2504, 9
      %v2507 = vpop.permute.xlu0 %2506
      %v2509 = vmul.f32 %v2493, %v2507
      %v2510 = vmul.f32 %v2494, %v2507
      %v2511 = vmul.f32 %v2495, %v2507
      %v2512 = vmul.f32 %v2496, %v2507
      %v2513 = vmul.f32 %v2497, %v2507
      %v2514 = vmul.f32 %v2498, %v2507
      %v2515 = vmul.f32 %v2499, %v2507
      %v2516 = vmul.f32 %v2500, %v2507
      %2525 = vrot.lane.b32.xlu0 %v2509, 119
      %v2526 = vpop.permute.xlu0 %2525
      %2527 = vrot.lane.b32.xlu0 %v2510, 119
      %v2528 = vpop.permute.xlu0 %2527
      %2529 = vrot.lane.b32.xlu0 %v2511, 119
      %v2530 = vpop.permute.xlu0 %2529
      %2531 = vrot.lane.b32.xlu0 %v2512, 119
      %v2532 = vpop.permute.xlu0 %2531
      %2533 = vrot.lane.b32.xlu0 %v2513, 119
      %v2534 = vpop.permute.xlu0 %2533
      %2535 = vrot.lane.b32.xlu0 %v2514, 119
      %v2536 = vpop.permute.xlu0 %2535
      %2537 = vrot.lane.b32.xlu0 %v2515, 119
      %v2538 = vpop.permute.xlu0 %2537
      %2539 = vrot.lane.b32.xlu0 %v2516, 119
      %v2540 = vpop.permute.xlu0 %2539
      %v2549 = vadd.f32 %v2453, %v2526
      %v2550 = vadd.f32 %v2454, %v2528
      %v2551 = vadd.f32 %v2455, %v2530
      %v2552 = vadd.f32 %v2456, %v2532
      %v2553 = vadd.f32 %v2457, %v2534
      %v2554 = vadd.f32 %v2458, %v2536
      %v2555 = vadd.f32 %v2459, %v2538
      %v2556 = vadd.f32 %v2460, %v2540
      %v2557 = vld [vmem:[%s348] sm:$0xff]
      %v2558 = vld [vmem:[%s348 + $0x8] sm:$0xff]
      %v2559 = vld [vmem:[%s348 + $0x10] sm:$0xff]
      %v2560 = vld [vmem:[%s348 + $0x18] sm:$0xff]
      %v2561 = vld [vmem:[%s348 + $0x20] sm:$0xff]
      %v2562 = vld [vmem:[%s348 + $0x28] sm:$0xff]
      %v2563 = vld [vmem:[%s348 + $0x30] sm:$0xff]
      %v2564 = vld [vmem:[%s348 + $0x38] sm:$0xff]
      %v2565 = vmul.f32 %v2557, 10.0
      %v2566 = vmul.f32 %v2558, 10.0
      %v2567 = vmul.f32 %v2559, 10.0
      %v2568 = vmul.f32 %v2560, 10.0
      %v2569 = vmul.f32 %v2561, 10.0
      %v2570 = vmul.f32 %v2562, 10.0
      %v2571 = vmul.f32 %v2563, 10.0
      %v2572 = vmul.f32 %v2564, 10.0
      %2574 = vset.pattern.permute.xlu0 0
      %2575 = vperm.xlu0 %2574, %v2565
      %v2576 = vpop.permute.xlu0 %2575
      %2579 = vset.pattern.permute.xlu0 0
      %2580 = vperm.xlu0 %2579, %v2566
      %v2581 = vpop.permute.xlu0 %2580
      %2584 = vset.pattern.permute.xlu0 0
      %2585 = vperm.xlu0 %2584, %v2567
      %v2586 = vpop.permute.xlu0 %2585
      %2589 = vset.pattern.permute.xlu0 0
      %2590 = vperm.xlu0 %2589, %v2568
      %v2591 = vpop.permute.xlu0 %2590
      %2594 = vset.pattern.permute.xlu0 0
      %2595 = vperm.xlu0 %2594, %v2569
      %v2596 = vpop.permute.xlu0 %2595
      %2599 = vset.pattern.permute.xlu0 0
      %2600 = vperm.xlu0 %2599, %v2570
      %v2601 = vpop.permute.xlu0 %2600
      %2604 = vset.pattern.permute.xlu0 0
      %2605 = vperm.xlu0 %2604, %v2571
      %v2606 = vpop.permute.xlu0 %2605
      %2609 = vset.pattern.permute.xlu0 0
      %2610 = vperm.xlu0 %2609, %v2572
      %v2611 = vpop.permute.xlu0 %2610
      %v2613 = vmul.f32 %v2549, %v2576
      %v2614 = vmul.f32 %v2550, %v2581
      %v2615 = vmul.f32 %v2551, %v2586
      %v2616 = vmul.f32 %v2552, %v2591
      %v2617 = vmul.f32 %v2553, %v2596
      %v2618 = vmul.f32 %v2554, %v2601
      %v2619 = vmul.f32 %v2555, %v2606
      %v2620 = vmul.f32 %v2556, %v2611
      %vm2621 = vcmask 523264
      %v2622 = vsel %vm2621, %v2613, -inf
      %v2623 = vsel %vm2621, %v2614, -inf
      %v2624 = vsel %vm2621, %v2615, -inf
      %v2625 = vsel %vm2621, %v2616, -inf
      %v2626 = vsel %vm2621, %v2617, -inf
      %v2627 = vmax.f32 %v2622, %v2626
      %v2628 = vsel %vm2621, %v2618, -inf
      %v2629 = vmax.f32 %v2623, %v2628
      %v2630 = vsel %vm2621, %v2619, -inf
      %v2631 = vmax.f32 %v2624, %v2630
      %v2632 = vsel %vm2621, %v2620, -inf
      %v2633 = vmax.f32 %v2625, %v2632
      %v2634 = vmax.f32 %v2627, %v2629
      %v2635 = vmax.f32 %v2631, %v2633
      %v2636 = vmax.f32 %v2634, %v2635
      %v2637 = vrot.slane %v2636, 4
      %v2638 = vmax.f32 %v2636, %v2637
      %v2639 = vrot.slane %v2638, 2
      %v2640 = vmax.f32 %v2638, %v2639
      %v2641 = vrot.slane %v2640, 1
      %v2642 = vmax.f32 %v2640, %v2641
      %v2643 = vsub.f32 %v2613, %v2642
      %v2644 = vsub.f32 %v2614, %v2642
      %v2645 = vsub.f32 %v2615, %v2642
      %v2646 = vsub.f32 %v2616, %v2642
      %v2647 = vsub.f32 %v2617, %v2642
      %v2648 = vsub.f32 %v2618, %v2642
      %v2649 = vsub.f32 %v2619, %v2642
      %v2650 = vsub.f32 %v2620, %v2642
      %v2651 = vmul.f32 %v2643, 1.442695
      %v2652 = vpow.pop %v2651
      %v2653 = vmul.f32 %v2644, 1.442695
      %v2654 = vpow.pop %v2653
      %v2655 = vmul.f32 %v2645, 1.442695
      %v2656 = vpow.pop %v2655
      %v2657 = vmul.f32 %v2646, 1.442695
      %v2658 = vpow.pop %v2657
      %v2659 = vmul.f32 %v2647, 1.442695
      %v2660 = vpow.pop %v2659
      %v2661 = vmul.f32 %v2648, 1.442695
      %v2662 = vpow.pop %v2661
      %v2663 = vmul.f32 %v2649, 1.442695
      %v2664 = vpow.pop %v2663
      %v2665 = vmul.f32 %v2650, 1.442695
      %v2666 = vpow.pop %v2665
      %v2667 = vsel %vm2621, %v2652, 0.0
      %v2668 = vsel %vm2621, %v2654, 0.0
      %v2669 = vadd.f32 %v2667, %v2668
      %v2670 = vsel %vm2621, %v2656, 0.0
      %v2671 = vadd.f32 %v2669, %v2670
      %v2672 = vsel %vm2621, %v2658, 0.0
      %v2673 = vadd.f32 %v2671, %v2672
      %v2674 = vsel %vm2621, %v2660, 0.0
      %v2675 = vadd.f32 %v2673, %v2674
      %v2676 = vsel %vm2621, %v2662, 0.0
      %v2677 = vadd.f32 %v2675, %v2676
      %v2678 = vsel %vm2621, %v2664, 0.0
      %v2679 = vadd.f32 %v2677, %v2678
      %v2680 = vsel %vm2621, %v2666, 0.0
      %v2681 = vadd.f32 %v2679, %v2680
      %v2682 = vrot.slane %v2681, 4
      %v2683 = vadd.f32 %v2681, %v2682
      %v2684 = vrot.slane %v2683, 2
      %v2685 = vadd.f32 %v2683, %v2684
      %v2686 = vrot.slane %v2685, 1
      %v2687 = vadd.f32 %v2685, %v2686
      %v2688 = vrcp.pop %v2687
      %v2689 = vmul.f32 %v2652, %v2688
      %v2690 = vmul.f32 %v2654, %v2688
      %v2691 = vmul.f32 %v2656, %v2688
      %v2692 = vmul.f32 %v2658, %v2688
      %v2693 = vmul.f32 %v2660, %v2688
      %v2694 = vmul.f32 %v2662, %v2688
      %v2695 = vmul.f32 %v2664, %v2688
      %v2696 = vmul.f32 %v2666, %v2688
      %2698 = vset.pattern.permute.xlu0 0
      %2699 = vperm.xlu0 %2698, %v2557
      %v2700 = vpop.permute.xlu0 %2699
      %2703 = vset.pattern.permute.xlu0 0
      %2704 = vperm.xlu0 %2703, %v2558
      %v2705 = vpop.permute.xlu0 %2704
      %2708 = vset.pattern.permute.xlu0 0
      %2709 = vperm.xlu0 %2708, %v2559
      %v2710 = vpop.permute.xlu0 %2709
      %2713 = vset.pattern.permute.xlu0 0
      %2714 = vperm.xlu0 %2713, %v2560
      %v2715 = vpop.permute.xlu0 %2714
      %2718 = vset.pattern.permute.xlu0 0
      %2719 = vperm.xlu0 %2718, %v2561
      %v2720 = vpop.permute.xlu0 %2719
      %2723 = vset.pattern.permute.xlu0 0
      %2724 = vperm.xlu0 %2723, %v2562
      %v2725 = vpop.permute.xlu0 %2724
      %2728 = vset.pattern.permute.xlu0 0
      %2729 = vperm.xlu0 %2728, %v2563
      %v2730 = vpop.permute.xlu0 %2729
      %2733 = vset.pattern.permute.xlu0 0
      %2734 = vperm.xlu0 %2733, %v2564
      %v2735 = vpop.permute.xlu0 %2734
      %v2737 = vmul.f32 %v2689, %v2700
      %v2738 = vmul.f32 %v2690, %v2705
      %v2739 = vmul.f32 %v2691, %v2710
      %v2740 = vmul.f32 %v2692, %v2715
      %v2741 = vmul.f32 %v2693, %v2720
      %v2742 = vmul.f32 %v2694, %v2725
      %v2743 = vmul.f32 %v2695, %v2730
      %v2744 = vmul.f32 %v2696, %v2735
      %v2745 = vld [vmem:[%s353] sm:$0xf]
      %v2746 = vld [vmem:[%s353 + $0x4] sm:$0xf]
      %v2747 = vld [vmem:[%s353 + $0x8] sm:$0xf]
      %v2748 = vld [vmem:[%s353 + $0xc] sm:$0xf]
      %v2749 = vld [vmem:[%s353 + $0x10] sm:$0xf]
      %v2750 = vld [vmem:[%s353 + $0x14] sm:$0xf]
      %v2751 = vld [vmem:[%s353 + $0x18] sm:$0xf]
      %v2752 = vld [vmem:[%s353 + $0x1c] sm:$0xf]
      %v2753 = vpack.c.bf16 %v2738, %v2737
      %v2754 = vpack.c.bf16 %v2740, %v2739
      %v2755 = vpack.c.bf16 %v2742, %v2741
      %v2756 = vpack.c.bf16 %v2744, %v2743
      %2757 = vxpose.xlu0.c.b16.start [1/8] %v2753, 128
      %2758 = vxpose.xlu0.c.b16.cont [2/8] %v2754, 128
      %2759 = vxpose.xlu0.c.b16.cont [3/8] %v2755, 128
      %2760 = vxpose.xlu0.c.b16.cont [4/8] %v2756, 128
      %2761 = vxpose.xlu0.c.b16.cont [5/8] 0, 128
      %2762 = vxpose.xlu0.c.b16.cont [6/8] 0, 128
      %2763 = vxpose.xlu0.c.b16.cont [7/8] 0, 128
      %2764 = vxpose.xlu0.c.b16.end [8/8] 0, 128
      %v2765 = vpop.trf.xlu0
      %v2766 = vpop.trf.xlu0
      %v2767 = vpop.trf.xlu0
      %v2768 = vpop.trf.xlu0
      %v2769 = vpop.trf.xlu0
      %v2770 = vpop.trf.xlu0
      %v2771 = vpop.trf.xlu0
      %v2772 = vpop.trf.xlu0
      %v2781 = vunpack.c.l.b16 %v2745
      %v2782 = vunpack.c.l.b16 %v2746
      %v2783 = vunpack.c.l.b16 %v2747
      %v2784 = vunpack.c.l.b16 %v2748
      %v2785 = vunpack.c.l.b16 %v2749
      %v2786 = vunpack.c.l.b16 %v2750
      %v2787 = vunpack.c.l.b16 %v2751
      %v2788 = vunpack.c.l.b16 %v2752
      %v2789 = vpack.c.b16 %v2782, %v2781
      %v2790 = vpack.c.b16 %v2784, %v2783
      %v2791 = vpack.c.b16 %v2786, %v2785
      %v2792 = vpack.c.b16 %v2788, %v2787
      %v2798 = vsel %vm2621, %v2765, 0
      %v2801 = vsel %vm2621, %v2766, 0
      %v2804 = vsel %vm2621, %v2767, 0
      %v2807 = vsel %vm2621, %v2768, 0
      %2809 = vmatprep.subr.bf16.mxu0 0
      %2810 = vmatpush1.bf16.msra.mxu0 %v2789
      %2811 = vmatprep.subr.bf16.mxu0 0
      %2812 = vmatpush1.bf16.msra.mxu0 %v2790
      %2813 = vmatprep.subr.bf16.mxu0 0
      %2814 = vmatpush1.bf16.msra.mxu0 %v2791
      %2815 = vmatprep.subr.bf16.mxu0 0
      %2816 = vmatpush1.bf16.msra.mxu0 %v2792
      %2817 = vmatprep.subr.bf16.mxu0 0
      %2818 = vmatpush1.bf16.msra.mxu0 0
      %2819 = vmatprep.subr.bf16.mxu0 0
      %2820 = vmatpush1.bf16.msra.mxu0 0
      %2821 = vmatprep.subr.bf16.mxu0 0
      %2822 = vmatpush1.bf16.msra.mxu0 0
      %2823 = vmatprep.subr.bf16.mxu0 0
      %2824 = vmatpush1.bf16.msra.mxu0 0
      %2825 = vmatprep.subr.bf16.mxu0 0
      %2826 = vmatpush1.bf16.msra.mxu0 0
      %2827 = vmatprep.subr.bf16.mxu0 0
      %2828 = vmatpush1.bf16.msra.mxu0 0
      %2829 = vmatprep.subr.bf16.mxu0 0
      %2830 = vmatpush1.bf16.msra.mxu0 0
      %2831 = vmatprep.subr.bf16.mxu0 0
      %2832 = vmatpush1.bf16.msra.mxu0 0
      %2833 = vmatprep.subr.bf16.mxu0 0
      %2834 = vmatpush1.bf16.msra.mxu0 0
      %2835 = vmatprep.subr.bf16.mxu0 0
      %2836 = vmatpush1.bf16.msra.mxu0 0
      %2837 = vmatprep.subr.bf16.mxu0 0
      %2838 = vmatpush1.bf16.msra.mxu0 0
      %2839 = vmatprep.subr.bf16.mxu0 0
      %2840 = vmatpush1.bf16.msra.mxu0 0
      %2841 = vmatprep.mubr.bf16.mxu0 0
      %2842 = vmatmul.mubr.bf16.gmra.mrb[0].mxu0 %v2798
      %v2843 = vpop.f32.mrb[0].mxu0
      %v2844 = vadd.f32 0.0, %v2843
      %v2845 = vpop.f32.mrb[0].mxu0
      %v2846 = vpop.f32.mrb[0].mxu0
      %v2847 = vadd.f32 0.0, %v2846
      %v2848 = vpop.f32.mrb[0].mxu0
      %2849 = vmatprep.mubr.bf16.mxu0 0
      %2850 = vmatmul.mubr.bf16.gmra.mrb[0].mxu0 %v2801
      %v2851 = vpop.f32.mrb[0].mxu0
      %v2852 = vadd.f32 0.0, %v2851
      %v2853 = vpop.f32.mrb[0].mxu0
      %v2854 = vpop.f32.mrb[0].mxu0
      %v2855 = vadd.f32 0.0, %v2854
      %v2856 = vpop.f32.mrb[0].mxu0
      %2857 = vmatprep.mubr.bf16.mxu0 0
      %2858 = vmatmul.mubr.bf16.gmra.mrb[0].mxu0 %v2804
      %v2859 = vpop.f32.mrb[0].mxu0
      %v2860 = vadd.f32 0.0, %v2859
      %v2861 = vpop.f32.mrb[0].mxu0
      %v2862 = vpop.f32.mrb[0].mxu0
      %v2863 = vadd.f32 0.0, %v2862
      %v2864 = vpop.f32.mrb[0].mxu0
      %2865 = vmatprep.mubr.bf16.mxu0 0
      %2866 = vmatmul.mubr.bf16.gmra.mrb[0].mxu0 %v2807
      %v2867 = vpop.f32.mrb[0].mxu0
      %v2868 = vadd.f32 0.0, %v2867
      %v2869 = vpop.f32.mrb[0].mxu0
      %v2870 = vpop.f32.mrb[0].mxu0
      %v2871 = vadd.f32 0.0, %v2870
      %v2872 = vpop.f32.mrb[0].mxu0
      %2873 = vdwg.mxu0
      %2874 = vst [vmem:[%s358] sm:$0xff] %v2844
      %2875 = vst [vmem:[%s358 + $0x8] sm:$0xff] %v2847
      %2876 = vst [vmem:[%s358 + $0x10] sm:$0xff] %v2852
      %2877 = vst [vmem:[%s358 + $0x18] sm:$0xff] %v2855
      %2878 = vst [vmem:[%s358 + $0x20] sm:$0xff] %v2860
      %2879 = vst [vmem:[%s358 + $0x28] sm:$0xff] %v2863
      %2880 = vst [vmem:[%s358 + $0x30] sm:$0xff] %v2868
      %2881 = vst [vmem:[%s358 + $0x38] sm:$0xff] %v2871
      %p2882 = scmp.lt.s32.totalorder %s18, 1
      %s2883 = scalar_select %p2882, %s18, 1
      %s2884 = smul.addr %s2883, 8
      %s2885 = smul.addr %s2884, 8
      %s2886 = scalar_lea.vmem %s7, %s2885
      // Predicated region
      $region49: #{contextual_attention.1} parent=47 // pred_check
        %p2887 = pneg %p208
      $region50: #{contextual_attention.1} parent=47 // pred_check_branch
        %2889 = sbr.rel (%p2887) target = $region52
      $region51: #{contextual_attention.1} parent=47 // pred_region
        _
      $region52: #{contextual_attention.1} parent=47 // pred_fallthru
        _
    $region48: #{contextual_attention.1} parent=5 // pred_fallthru
      _
    %p2890 = scmp.le.s32.totalorder 2, %s13
    // Predicated region
    $region53: #{contextual_attention.1} parent=5 // pred_check
      %p2891 = pneg %p2890
    $region54: #{contextual_attention.1} parent=5 // pred_check_branch
      %2893 = sbr.rel (%p2891) target = $region56
    $region55: #{contextual_attention.1} parent=5 // pred_region
      %s2894 = ssub.s32 %s13, 2
      // Predicated region
      $region57: #{contextual_attention.1} parent=55 // pred_check
        %p2895 = pneg %p214
      $region58: #{contextual_attention.1} parent=55 // pred_check_branch
        %2897 = sbr.rel (%p2895) target = $region60
      $region59: #{contextual_attention.1} parent=55 // pred_region
        %p2898 = scmp.lt.s32.totalorder %s19, 1
        %s2899 = scalar_select %p2898, %s19, 1
        %s2900 = smul.addr %s2899, 8
        %s2901 = smul.addr %s2900, 8
        %s2902 = scalar_lea.vmem %s7, %s2901
      $region60: #{contextual_attention.1} parent=55 // pred_fallthru
        _
    $region56: #{contextual_attention.1} parent=5 // pred_fallthru
      _
  $region6: #{contextual_attention.1} parent=0 // loop_footer
    %s17 = sadd.s32 1, %s13
  $region7: #{contextual_attention.1} parent=0 // loop_footer_branch
    %12 = sbr.rel target = $region3
  $region8: #{contextual_attention.1} parent=0 // loop_exit
    _

</llo_original>
